<compile_context>
chip_gen: v5e
topology: v5e:2x2
jax: 0.10.0
libtpu: 0.0.40
codegen_flags: <defaults>
</compile_context>

<pallas_src>
import functools

import jax
import jax.numpy as jnp
from jax.experimental import pallas as pl
from jax.experimental.pallas import tpu as pltpu

_MiB = 1 << 20


# ----------------------------------------------------------------------------
# Sizing helpers
# ----------------------------------------------------------------------------
def _round_up(x, m):
    return (x + m - 1) // m * m


def _vmem_budget():
    """Generation-aware scoped-VMEM budget (v7x: 64 MiB phys, v5e/v6e: 128)."""
    try:
        cap = pltpu.get_tpu_info().vmem_capacity_bytes
    except Exception:
        cap = 64 * _MiB  # conservative default works on every generation
    return min(int(cap * 0.65), 100 * _MiB)


# ----------------------------------------------------------------------------
# Kernel 1: tiled matmul + bias (all Linear layers), bf16 MXU / f32 accumulate.
# Activation cast to bf16 happens in-kernel; weights arrive bf16 from params.
# ----------------------------------------------------------------------------
def _matmul_bias_kernel(x_ref, w_ref, b_ref, o_ref, acc_ref):
    @pl.when(pl.program_id(2) == 0)
    def _():
        acc_ref[...] = jnp.zeros_like(acc_ref)

    acc_ref[...] += jnp.dot(x_ref[...].astype(jnp.bfloat16),
                            w_ref[...].astype(jnp.bfloat16),
                            preferred_element_type=jnp.float32)

    @pl.when(pl.program_id(2) == pl.num_programs(2) - 1)
    def _():
        o_ref[...] = (acc_ref[...] + b_ref[...]).astype(o_ref.dtype)


def matmul_bias(x, w, b, out_dtype=jnp.float32):
    """(M, K) @ (K, N) + b, tiled and pipelined on the MXU.

    N is padded to a multiple of 128 (lane-dense stores), M to a multiple of
    the row tile; tiles are sized from the per-generation VMEM budget.
    """
    M, K = x.shape
    K2, N = w.shape
    assert K == K2
    budget = _vmem_budget()

    # Lane-dense output: pad N up to a multiple of 128.
    Np = max(128, _round_up(N, 128))
    tn = Np
    for cand in (512, 256, 128):          # prefer >=256 for v6e/v7x MXU width
        if Np % cand == 0:
            tn = cand
            break

    if K % 256 == 0:
        tk = 512 if K % 512 == 0 else 256
    else:
        tk = K                             # full K (small d_model etc.)

    xb = jnp.dtype(x.dtype).itemsize
    ob = jnp.dtype(out_dtype).itemsize
    tm = 8
    for cand in (512, 256, 128, 64, 32, 16, 8):
        fp = (2 * (cand * tk * xb + tk * tn * 2 + tn * 4)   # dbl-buffered ins
              + cand * tn * 4                               # f32 accumulator
              + 2 * cand * tn * ob)                         # dbl-buffered out
        if fp <= budget:
            tm = cand
            break
    tm = min(tm, _round_up(M, 8))          # never tile wider than (padded) M
    Mp = _round_up(M, tm)

    x_p = x if Mp == M else jnp.pad(x, ((0, Mp - M), (0, 0)))
    if Np != N:
        w_p = jnp.pad(w, ((0, 0), (0, Np - N)))
        b_p = jnp.pad(b, ((0, Np - N),))
    else:
        w_p, b_p = w, b

    grid = (Mp // tm, Np // tn, K // tk)
    out = pl.pallas_call(
        _matmul_bias_kernel,
        out_shape=jax.ShapeDtypeStruct((Mp, Np), out_dtype),
        grid=grid,
        in_specs=[
            pl.BlockSpec((tm, tk), lambda i, j, k: (i, k)),
            pl.BlockSpec((tk, tn), lambda i, j, k: (k, j)),
            pl.BlockSpec((1, tn), lambda i, j, k: (0, j)),
        ],
        out_specs=pl.BlockSpec((tm, tn), lambda i, j, k: (i, j)),
        scratch_shapes=[pltpu.VMEM((tm, tn), jnp.float32)],
        compiler_params=pltpu.CompilerParams(
            dimension_semantics=("parallel", "parallel", "arbitrary"),
            vmem_limit_bytes=budget),
    )(x_p, w_p, b_p.reshape(1, Np).astype(jnp.float32))
    return out[:M, :N]


# ----------------------------------------------------------------------------
# Kernel 2: fused residual + LayerNorm1 + FFN(relu) + residual + LayerNorm2.
# Row-tiled over M; weights pinned to block (0, 0); LN statistics in f32;
# FFN dots in bf16 on the MXU with f32 accumulation.
# ----------------------------------------------------------------------------
def _post_kernel(src_ref, attn_ref, g1_ref, be1_ref, w1_ref, b1_ref,
                 w2_ref, b2_ref, g2_ref, be2_ref, o_ref):
    eps = 1e-5
    x = src_ref[...].astype(jnp.float32) + attn_ref[...].astype(jnp.float32)
    mu = jnp.mean(x, axis=-1, keepdims=True)
    var = jnp.mean(jnp.square(x - mu), axis=-1, keepdims=True)
    x = (x - mu) * jax.lax.rsqrt(var + eps) * g1_ref[...] + be1_ref[...]
    h = jnp.dot(x.astype(jnp.bfloat16), w1_ref[...],
                preferred_element_type=jnp.float32) + b1_ref[...]
    h = jnp.maximum(h, 0.0)
    y = jnp.dot(h.astype(jnp.bfloat16), w2_ref[...],
                preferred_element_type=jnp.float32) + b2_ref[...]
    x = x + y
    mu2 = jnp.mean(x, axis=-1, keepdims=True)
    var2 = jnp.mean(jnp.square(x - mu2), axis=-1, keepdims=True)
    o_ref[...] = ((x - mu2) * jax.lax.rsqrt(var2 + eps) * g2_ref[...]
                  + be2_ref[...]).astype(o_ref.dtype)


def fused_post(src2d, attn2d, g1, be1, w1, b1, w2, b2, g2, be2):
    M, D = src2d.shape
    F = w1.shape[1]
    budget = _vmem_budget()

    tm = 8
    for cand in (256, 128, 64, 32, 16, 8):   # cap at 256: limits (tm,F) spill
        fp = (2 * 2 * cand * D * 4            # src + attn, double-buffered
              + (D * F + F * D) * 2           # bf16 FFN weights (pinned)
              + (5 * D + F) * 4               # LN params + biases
              + 2 * cand * D * 4              # output, double-buffered
              + cand * F * 4 + cand * D * 4)  # live intermediates headroom
        if fp <= budget:
            tm = cand
            break
    tm = min(tm, _round_up(M, 8))
    Mp = _round_up(M, tm)

    if Mp != M:
        src2d = jnp.pad(src2d, ((0, Mp - M), (0, 0)))
        attn2d = jnp.pad(attn2d, ((0, Mp - M), (0, 0)))

    def pin(s):
        return pl.BlockSpec(s, lambda i: tuple(0 for _ in s))

    out = pl.pallas_call(
        _post_kernel,
        out_shape=jax.ShapeDtypeStruct((Mp, D), jnp.float32),
        grid=(Mp // tm,),
        in_specs=[
            pl.BlockSpec((tm, D), lambda i: (i, 0)),
            pl.BlockSpec((tm, D), lambda i: (i, 0)),
            pin((1, D)), pin((1, D)),
            pin((D, F)), pin((1, F)),
            pin((F, D)), pin((1, D)),
            pin((1, D)), pin((1, D)),
        ],
        out_specs=pl.BlockSpec((tm, D), lambda i: (i, 0)),
        compiler_params=pltpu.CompilerParams(
            dimension_semantics=("parallel",),
            vmem_limit_bytes=budget),
    )(src2d, attn2d,
      g1.reshape(1, D), be1.reshape(1, D),
      w1, b1.reshape(1, F).astype(jnp.float32),
      w2, b2.reshape(1, D).astype(jnp.float32),
      g2.reshape(1, D), be2.reshape(1, D))
    return out[:M]


# ----------------------------------------------------------------------------
# Glue: bilinear corner indices / coefficients (grid_sample semantics,
# align_corners=False, padding_mode='zeros'), row-wise gather, and the
# f32 coefficient-weighted reduction over samples.
# ----------------------------------------------------------------------------
def build_gather_indices(loc, aw, spatial_shapes_list, level_start_list):
    """loc: (B,Q,H,L,P,2) normalized [0,1] (x=width, y=height); aw: (B,Q,H,L,P).
    Returns flat value indices (B,Q,H,S) and coefficients (B,Q,H,S), S=L*P*4."""
    B, Q, H, L, P, _ = loc.shape
    idx_levels, coef_levels = [], []
    for l, (Hl, Wl) in enumerate(spatial_shapes_list):
        start = level_start_list[l]
        lx = loc[:, :, :, l, :, 0] * Wl - 0.5          # (B,Q,H,P) pixel coords
        ly = loc[:, :, :, l, :, 1] * Hl - 0.5
        x0 = jnp.floor(lx)
        y0 = jnp.floor(ly)
        dx = lx - x0
        dy = ly - y0
        a = aw[:, :, :, l, :]
        corners = [
            (y0,       x0,       (1.0 - dy) * (1.0 - dx)),
            (y0,       x0 + 1.0, (1.0 - dy) * dx),
            (y0 + 1.0, x0,       dy * (1.0 - dx)),
            (y0 + 1.0, x0 + 1.0, dy * dx),
        ]
        idx_c, coef_c = [], []
        for cy, cx, w in corners:
            valid = ((cx >= 0) & (cx <= Wl - 1) & (cy >= 0) & (cy <= Hl - 1))
            cyi = jnp.clip(cy, 0, Hl - 1).astype(jnp.int32)
            cxi = jnp.clip(cx, 0, Wl - 1).astype(jnp.int32)
            idx_c.append(start + cyi * Wl + cxi)
            coef_c.append(a * w * valid.astype(jnp.float32))
        idx_levels.append(jnp.stack(idx_c, axis=-1))    # (B,Q,H,P,4)
        coef_levels.append(jnp.stack(coef_c, axis=-1))
    idx = jnp.stack(idx_levels, axis=3)                 # (B,Q,H,L,P,4)
    coef = jnp.stack(coef_levels, axis=3)
    S = L * P * 4
    return idx.reshape(B, Q, H, S), coef.reshape(B, Q, H, S)


def gather_and_reduce(value_heads, idx, coef):
    """value_heads: (B,V,H,Dh) bf16; idx/coef: (B,Q,H,S).
    Row-wise gather of whole Dh rows per (b,h), then f32 reduction over S.
    Returns (B*Q, H*Dh) f32 — the input to the output projection."""
    B, V, H, Dh = value_heads.shape
    _, Q, _, S = idx.shape
    vh = value_heads.transpose(0, 2, 1, 3)                      # (B,H,V,Dh)
    idx_t = idx.transpose(0, 2, 1, 3).reshape(B, H, Q * S)      # (B,H,Q*S)
    # TODO(synk): data-dependent bilinear gather stays in XLA (no rectangular
    # BlockSpec equivalent); only O(Q*H*S*Dh) rows are touched, no (Q,V) matrix.
    g = jax.vmap(jax.vmap(
        lambda v, i: jnp.take(v, i, axis=0, mode="clip")))(vh, idx_t)
    g = g.reshape(B, H, Q, S, Dh)                               # bf16
    coef_t = coef.transpose(0, 2, 1, 3)                         # (B,H,Q,S) f32
    red = jnp.einsum("bhqsd,bhqs->bqhd", g, coef_t,
                     preferred_element_type=jnp.float32)        # f32 reduce
    return red.reshape(B * Q, H * Dh)


# ----------------------------------------------------------------------------
# MSDeformAttn + encoder layer forward
# ----------------------------------------------------------------------------
def ms_deform_attn(src, pos, reference_points, spatial_shapes_list,
                   level_start_list, params, key_padding_mask=None):
    B, Lq, D = src.shape
    H = params["n_heads"]
    L = params["n_levels"]
    P = params["n_points"]
    Dh = D // H

    query = src + pos                               # with_pos_embed
    q2 = query.reshape(B * Lq, D)
    v2 = src.reshape(B * Lq, D)

    # value projection (tiled Pallas matmul) -> bf16 (consumer is the gather)
    value = matmul_bias(v2, params["value_proj_w"], params["value_proj_b"],
                        out_dtype=jnp.bfloat16)
    value_heads = value.reshape(B, Lq, H, Dh)

    # fused sampling-offsets + attention-weights projection (one matmul)
    off_dim = H * L * P * 2
    comb = matmul_bias(q2, params["comb_w"], params["comb_b"],
                       out_dtype=jnp.float32)
    off = comb[:, :off_dim].reshape(B, Lq, H, L, P, 2)
    aw = comb[:, off_dim:].reshape(B, Lq, H, L * P)
    aw = jax.nn.softmax(aw, axis=-1).reshape(B, Lq, H, L, P)   # tiny glue

    # sampling locations: ref + offset / (W, H) per level
    offset_norm = jnp.asarray(
        [[w, h] for (h, w) in spatial_shapes_list], dtype=jnp.float32)  # (L,2)
    loc = (reference_points[:, :, None, :, None, :]
           + off / offset_norm[None, None, None, :, None, :])

    # bilinear corner indices + coefficients (tiny elementwise glue)
    idx, coef = build_gather_indices(loc, aw, spatial_shapes_list,
                                     level_start_list)

    if key_padding_mask is not None:
        # fold padding into the gather coefficients (no full-value rewrite)
        pad_f = key_padding_mask.astype(jnp.float32)            # (B, V)
        gathered_pad = jnp.take_along_axis(
            pad_f, idx.reshape(B, -1), axis=1).reshape(idx.shape)
        coef = coef * (1.0 - gathered_pad)

    # row-wise gather + f32 weighted reduction over samples, then out-proj
    red = gather_and_reduce(value_heads, idx, coef)             # (B*Lq, H*Dh)
    out = matmul_bias(red, params["out_proj_w"], params["out_proj_b"],
                      out_dtype=jnp.float32)
    return out.reshape(B, Lq, D)


def encoder_layer_forward(src, pos, reference_points, spatial_shapes_list,
                          level_start_list, params, key_padding_mask=None):
    B, Lq, D = src.shape
    attn = ms_deform_attn(src, pos, reference_points, spatial_shapes_list,
                          level_start_list, params, key_padding_mask)
    out = fused_post(
        src.reshape(B * Lq, D), attn.reshape(B * Lq, D),
        params["ln1_g"], params["ln1_b"],
        params["ffn_w1"], params["ffn_b1"],
        params["ffn_w2"], params["ffn_b2"],
        params["ln2_g"], params["ln2_b"],
    )
    return out.reshape(B, Lq, D)


# ----------------------------------------------------------------------------
# Deterministic parameter construction (matmul weights stored in bf16 once;
# biases / LayerNorm parameters in f32).
# ----------------------------------------------------------------------------
def make_params(key, d_model, d_ffn, n_heads, n_levels, n_points):
    ks = jax.random.split(key, 12)
    s = 0.02
    off_dim = n_heads * n_levels * n_points * 2
    aw_dim = n_heads * n_levels * n_points
    samp_off_w = s * jax.random.normal(ks[1], (d_model, off_dim), jnp.float32)
    samp_off_b = 0.5 * jax.random.normal(ks[2], (off_dim,), jnp.float32)
    attn_w_w = s * jax.random.normal(ks[3], (d_model, aw_dim), jnp.float32)
    attn_w_b = jnp.zeros((aw_dim,), jnp.float32)
    return {
        "n_heads": n_heads, "n_levels": n_levels, "n_points": n_points,
        "value_proj_w": (s * jax.random.normal(
            ks[0], (d_model, d_model), jnp.float32)).astype(jnp.bfloat16),
        "value_proj_b": jnp.zeros((d_model,), jnp.float32),
        # sampling-offsets + attention-weights projections fused into one W
        "comb_w": jnp.concatenate([samp_off_w, attn_w_w],
                                  axis=1).astype(jnp.bfloat16),
        "comb_b": jnp.concatenate([samp_off_b, attn_w_b], axis=0),
        "out_proj_w": (s * jax.random.normal(
            ks[4], (d_model, d_model), jnp.float32)).astype(jnp.bfloat16),
        "out_proj_b": jnp.zeros((d_model,), jnp.float32),
        "ln1_g": jnp.ones((d_model,), jnp.float32),
        "ln1_b": jnp.zeros((d_model,), jnp.float32),
        "ffn_w1": (s * jax.random.normal(
            ks[5], (d_model, d_ffn), jnp.float32)).astype(jnp.bfloat16),
        "ffn_b1": jnp.zeros((d_ffn,), jnp.float32),
        "ffn_w2": (s * jax.random.normal(
            ks[6], (d_ffn, d_model), jnp.float32)).astype(jnp.bfloat16),
        "ffn_b2": jnp.zeros((d_model,), jnp.float32),
        "ln2_g": jnp.ones((d_model,), jnp.float32),
        "ln2_b": jnp.zeros((d_model,), jnp.float32),
    }


if __name__ == "__main__":
    # Small config consistent with the module: d_model divisible by n_heads,
    # multi-level flattened feature pyramid as src/value (encoder: Q == V).
    d_model, d_ffn, n_heads, n_levels, n_points = 32, 64, 4, 2, 2
    spatial_shapes_list = [(8, 8), (4, 4)]           # (H, W) per level
    level_start_list = [0, 64]
    Lq = sum(h * w for h, w in spatial_shapes_list)  # 80
    B = 2

    key = jax.random.PRNGKey(0)
    k_src, k_pos, k_ref, k_par = jax.random.split(key, 4)
    src = jax.random.normal(k_src, (B, Lq, d_model), jnp.float32)
    pos = jax.random.normal(k_pos, (B, Lq, d_model), jnp.float32)
    reference_points = jax.random.uniform(k_ref, (B, Lq, n_levels, 2),
                                          jnp.float32)
    params = make_params(k_par, d_model, d_ffn, n_heads, n_levels, n_points)

    fwd = jax.jit(functools.partial(
        encoder_layer_forward,
        spatial_shapes_list=spatial_shapes_list,
        level_start_list=level_start_list,
        params=params,
        key_padding_mask=None,
    ))
    out = fwd(src, pos, reference_points)
    out = jax.block_until_ready(out)
    assert out.shape == (B, Lq, d_model)
    assert bool(jnp.all(jnp.isfinite(out)))
    print("KERNEL_OK")
</pallas_src>

<mosaic_0001>
module attributes {stable_mosaic.version = 11 : i64} {
  func.func @_matmul_bias_kernel(%arg0: i32, %arg1: i32, %arg2: i32, %arg3: memref<160x32xf32, #tpu.memory_space<vmem>>, %arg4: memref<32x128xbf16, #tpu.memory_space<vmem>>, %arg5: memref<1x128xf32, #tpu.memory_space<vmem>>, %arg6: memref<160x128xbf16, #tpu.memory_space<vmem>>, %arg7: memref<160x128xf32, #tpu.memory_space<vmem>>) attributes {dimension_semantics = [#tpu.dimension_semantics<parallel>, #tpu.dimension_semantics<parallel>, #tpu.dimension_semantics<arbitrary>], iteration_bounds = array<i64: 1, 1, 1>, scalar_prefetch = 0 : i64, scratch_operands = 1 : i64, tpu.core_type = #tpu.core_type<tc>, window_params = [{transform_indices = @transform_0, window_bounds = array<i64: 160, 32>}, {transform_indices = @transform_1, window_bounds = array<i64: 32, 128>}, {transform_indices = @transform_2, window_bounds = array<i64: 1, 128>}, {transform_indices = @transform_3, window_bounds = array<i64: 160, 128>}]} {
    %c0_i32 = arith.constant 0 : i32
    %0 = arith.cmpi eq, %arg2, %c0_i32 : i32
    %1 = arith.extui %0 : i1 to i32
    %c0_i32_0 = arith.constant 0 : i32
    %2 = arith.cmpi ne, %1, %c0_i32_0 : i32
    scf.if %2 {
      %cst_10 = arith.constant 0.000000e+00 : f32
      %13 = vector.broadcast %cst_10 : f32 to vector<160x128xf32>
      %c0_11 = arith.constant 0 : index
      %c0_12 = arith.constant 0 : index
      %14 = vector.load %arg7[%c0_11, %c0_12] : memref<160x128xf32, #tpu.memory_space<vmem>>, vector<160x128xf32>
      tpu.vector_store %arg7[%c0_11, %c0_12], %13 {strides = array<i32>} : memref<160x128xf32, #tpu.memory_space<vmem>>, vector<160x128xf32>,
    } else {
    }
    %c0 = arith.constant 0 : index
    %c0_1 = arith.constant 0 : index
    %3 = vector.load %arg7[%c0, %c0_1] : memref<160x128xf32, #tpu.memory_space<vmem>>, vector<160x128xf32>
    %c0_2 = arith.constant 0 : index
    %c0_3 = arith.constant 0 : index
    %4 = vector.load %arg3[%c0_2, %c0_3] : memref<160x32xf32, #tpu.memory_space<vmem>>, vector<160x32xf32>
    %5 = arith.truncf %4 : vector<160x32xf32> to vector<160x32xbf16>
    %c0_4 = arith.constant 0 : index
    %c0_5 = arith.constant 0 : index
    %6 = vector.load %arg4[%c0_4, %c0_5] : memref<32x128xbf16, #tpu.memory_space<vmem>>, vector<32x128xbf16>
    %cst = arith.constant dense<0.000000e+00> : vector<160x128xf32>
    %7 = tpu.matmul %5, %6, %cst {dimension_numbers = #tpu.dot_dimension_numbers<[1], [0], [0], [1], [0, 0, 1, 1], [], []>} : vector<160x32xbf16>, vector<32x128xbf16>, vector<160x128xf32> -> vector<160x128xf32>
    %8 = arith.addf %3, %7 : vector<160x128xf32>
    %c0_6 = arith.constant 0 : index
    %c0_7 = arith.constant 0 : index
    %9 = vector.load %arg7[%c0_6, %c0_7] : memref<160x128xf32, #tpu.memory_space<vmem>>, vector<160x128xf32>
    tpu.vector_store %arg7[%c0_6, %c0_7], %8 {strides = array<i32>} : memref<160x128xf32, #tpu.memory_space<vmem>>, vector<160x128xf32>,
    %c0_i32_8 = arith.constant 0 : i32
    %10 = arith.cmpi eq, %arg2, %c0_i32_8 : i32
    %11 = arith.extui %10 : i1 to i32
    %c0_i32_9 = arith.constant 0 : i32
    %12 = arith.cmpi ne, %11, %c0_i32_9 : i32
    scf.if %12 {
      %c0_10 = arith.constant 0 : index
      %c0_11 = arith.constant 0 : index
      %13 = vector.load %arg7[%c0_10, %c0_11] : memref<160x128xf32, #tpu.memory_space<vmem>>, vector<160x128xf32>
      %c0_12 = arith.constant 0 : index
      %c0_13 = arith.constant 0 : index
      %14 = vector.load %arg5[%c0_12, %c0_13] : memref<1x128xf32, #tpu.memory_space<vmem>>, vector<1x128xf32>
      %15 = vector.broadcast %14 : vector<1x128xf32> to vector<160x128xf32>
      %16 = arith.addf %13, %15 : vector<160x128xf32>
      %17 = arith.truncf %16 : vector<160x128xf32> to vector<160x128xbf16>
      %c0_14 = arith.constant 0 : index
      %c0_15 = arith.constant 0 : index
      %18 = vector.load %arg6[%c0_14, %c0_15] : memref<160x128xbf16, #tpu.memory_space<vmem>>, vector<160x128xbf16>
      tpu.vector_store %arg6[%c0_14, %c0_15], %17 {strides = array<i32>} : memref<160x128xbf16, #tpu.memory_space<vmem>>, vector<160x128xbf16>,
    } else {
    }
    return
  }
  func.func @transform_0(%arg0: i32, %arg1: i32, %arg2: i32) -> (i32, i32) {
    %c0_i32 = arith.constant 0 : i32
    return %arg0, %arg2 : i32, i32
  }
  func.func @transform_1(%arg0: i32, %arg1: i32, %arg2: i32) -> (i32, i32) {
    %c0_i32 = arith.constant 0 : i32
    return %arg2, %arg1 : i32, i32
  }
  func.func @transform_2(%arg0: i32, %arg1: i32, %arg2: i32) -> (i32, i32) {
    %c0_i32 = arith.constant 0 : i32
    %c0_i32_0 = arith.constant 0 : i32
    return %c0_i32, %arg1 : i32, i32
  }
  func.func @transform_3(%arg0: i32, %arg1: i32, %arg2: i32) -> (i32, i32) {
    %c0_i32 = arith.constant 0 : i32
    return %arg0, %arg1 : i32, i32
  }
}

module attributes {stable_mosaic.version = 11 : i64} {
  func.func @_matmul_bias_kernel(%arg0: i32, %arg1: i32, %arg2: i32, %arg3: memref<160x32xf32, #tpu.memory_space<vmem>>, %arg4: memref<32x128xbf16, #tpu.memory_space<vmem>>, %arg5: memref<1x128xf32, #tpu.memory_space<vmem>>, %arg6: memref<160x128xf32, #tpu.memory_space<vmem>>, %arg7: memref<160x128xf32, #tpu.memory_space<vmem>>) attributes {dimension_semantics = [#tpu.dimension_semantics<parallel>, #tpu.dimension_semantics<parallel>, #tpu.dimension_semantics<arbitrary>], iteration_bounds = array<i64: 1, 1, 1>, scalar_prefetch = 0 : i64, scratch_operands = 1 : i64, tpu.core_type = #tpu.core_type<tc>, window_params = [{transform_indices = @transform_0, window_bounds = array<i64: 160, 32>}, {transform_indices = @transform_1, window_bounds = array<i64: 32, 128>}, {transform_indices = @transform_2, window_bounds = array<i64: 1, 128>}, {transform_indices = @transform_3, window_bounds = array<i64: 160, 128>}]} {
    %c0_i32 = arith.constant 0 : i32
    %0 = arith.cmpi eq, %arg2, %c0_i32 : i32
    %1 = arith.extui %0 : i1 to i32
    %c0_i32_0 = arith.constant 0 : i32
    %2 = arith.cmpi ne, %1, %c0_i32_0 : i32
    scf.if %2 {
      %cst_10 = arith.constant 0.000000e+00 : f32
      %13 = vector.broadcast %cst_10 : f32 to vector<160x128xf32>
      %c0_11 = arith.constant 0 : index
      %c0_12 = arith.constant 0 : index
      %14 = vector.load %arg7[%c0_11, %c0_12] : memref<160x128xf32, #tpu.memory_space<vmem>>, vector<160x128xf32>
      tpu.vector_store %arg7[%c0_11, %c0_12], %13 {strides = array<i32>} : memref<160x128xf32, #tpu.memory_space<vmem>>, vector<160x128xf32>,
    } else {
    }
    %c0 = arith.constant 0 : index
    %c0_1 = arith.constant 0 : index
    %3 = vector.load %arg7[%c0, %c0_1] : memref<160x128xf32, #tpu.memory_space<vmem>>, vector<160x128xf32>
    %c0_2 = arith.constant 0 : index
    %c0_3 = arith.constant 0 : index
    %4 = vector.load %arg3[%c0_2, %c0_3] : memref<160x32xf32, #tpu.memory_space<vmem>>, vector<160x32xf32>
    %5 = arith.truncf %4 : vector<160x32xf32> to vector<160x32xbf16>
    %c0_4 = arith.constant 0 : index
    %c0_5 = arith.constant 0 : index
    %6 = vector.load %arg4[%c0_4, %c0_5] : memref<32x128xbf16, #tpu.memory_space<vmem>>, vector<32x128xbf16>
    %cst = arith.constant dense<0.000000e+00> : vector<160x128xf32>
    %7 = tpu.matmul %5, %6, %cst {dimension_numbers = #tpu.dot_dimension_numbers<[1], [0], [0], [1], [0, 0, 1, 1], [], []>} : vector<160x32xbf16>, vector<32x128xbf16>, vector<160x128xf32> -> vector<160x128xf32>
    %8 = arith.addf %3, %7 : vector<160x128xf32>
    %c0_6 = arith.constant 0 : index
    %c0_7 = arith.constant 0 : index
    %9 = vector.load %arg7[%c0_6, %c0_7] : memref<160x128xf32, #tpu.memory_space<vmem>>, vector<160x128xf32>
    tpu.vector_store %arg7[%c0_6, %c0_7], %8 {strides = array<i32>} : memref<160x128xf32, #tpu.memory_space<vmem>>, vector<160x128xf32>,
    %c0_i32_8 = arith.constant 0 : i32
    %10 = arith.cmpi eq, %arg2, %c0_i32_8 : i32
    %11 = arith.extui %10 : i1 to i32
    %c0_i32_9 = arith.constant 0 : i32
    %12 = arith.cmpi ne, %11, %c0_i32_9 : i32
    scf.if %12 {
      %c0_10 = arith.constant 0 : index
      %c0_11 = arith.constant 0 : index
      %13 = vector.load %arg7[%c0_10, %c0_11] : memref<160x128xf32, #tpu.memory_space<vmem>>, vector<160x128xf32>
      %c0_12 = arith.constant 0 : index
      %c0_13 = arith.constant 0 : index
      %14 = vector.load %arg5[%c0_12, %c0_13] : memref<1x128xf32, #tpu.memory_space<vmem>>, vector<1x128xf32>
      %15 = vector.broadcast %14 : vector<1x128xf32> to vector<160x128xf32>
      %16 = arith.addf %13, %15 : vector<160x128xf32>
      %c0_14 = arith.constant 0 : index
      %c0_15 = arith.constant 0 : index
      %17 = vector.load %arg6[%c0_14, %c0_15] : memref<160x128xf32, #tpu.memory_space<vmem>>, vector<160x128xf32>
      tpu.vector_store %arg6[%c0_14, %c0_15], %16 {strides = array<i32>} : memref<160x128xf32, #tpu.memory_space<vmem>>, vector<160x128xf32>,
    } else {
    }
    return
  }
  func.func @transform_0(%arg0: i32, %arg1: i32, %arg2: i32) -> (i32, i32) {
    %c0_i32 = arith.constant 0 : i32
    return %arg0, %arg2 : i32, i32
  }
  func.func @transform_1(%arg0: i32, %arg1: i32, %arg2: i32) -> (i32, i32) {
    %c0_i32 = arith.constant 0 : i32
    return %arg2, %arg1 : i32, i32
  }
  func.func @transform_2(%arg0: i32, %arg1: i32, %arg2: i32) -> (i32, i32) {
    %c0_i32 = arith.constant 0 : i32
    %c0_i32_0 = arith.constant 0 : i32
    return %c0_i32, %arg1 : i32, i32
  }
  func.func @transform_3(%arg0: i32, %arg1: i32, %arg2: i32) -> (i32, i32) {
    %c0_i32 = arith.constant 0 : i32
    return %arg0, %arg1 : i32, i32
  }
}

module attributes {stable_mosaic.version = 11 : i64} {
  func.func @_matmul_bias_kernel(%arg0: i32, %arg1: i32, %arg2: i32, %arg3: memref<160x32xf32, #tpu.memory_space<vmem>>, %arg4: memref<32x128xbf16, #tpu.memory_space<vmem>>, %arg5: memref<1x128xf32, #tpu.memory_space<vmem>>, %arg6: memref<160x128xf32, #tpu.memory_space<vmem>>, %arg7: memref<160x128xf32, #tpu.memory_space<vmem>>) attributes {dimension_semantics = [#tpu.dimension_semantics<parallel>, #tpu.dimension_semantics<parallel>, #tpu.dimension_semantics<arbitrary>], iteration_bounds = array<i64: 1, 1, 1>, scalar_prefetch = 0 : i64, scratch_operands = 1 : i64, tpu.core_type = #tpu.core_type<tc>, window_params = [{transform_indices = @transform_0, window_bounds = array<i64: 160, 32>}, {transform_indices = @transform_1, window_bounds = array<i64: 32, 128>}, {transform_indices = @transform_2, window_bounds = array<i64: 1, 128>}, {transform_indices = @transform_3, window_bounds = array<i64: 160, 128>}]} {
    %c0_i32 = arith.constant 0 : i32
    %0 = arith.cmpi eq, %arg2, %c0_i32 : i32
    %1 = arith.extui %0 : i1 to i32
    %c0_i32_0 = arith.constant 0 : i32
    %2 = arith.cmpi ne, %1, %c0_i32_0 : i32
    scf.if %2 {
      %cst_10 = arith.constant 0.000000e+00 : f32
      %13 = vector.broadcast %cst_10 : f32 to vector<160x128xf32>
      %c0_11 = arith.constant 0 : index
      %c0_12 = arith.constant 0 : index
      %14 = vector.load %arg7[%c0_11, %c0_12] : memref<160x128xf32, #tpu.memory_space<vmem>>, vector<160x128xf32>
      tpu.vector_store %arg7[%c0_11, %c0_12], %13 {strides = array<i32>} : memref<160x128xf32, #tpu.memory_space<vmem>>, vector<160x128xf32>,
    } else {
    }
    %c0 = arith.constant 0 : index
    %c0_1 = arith.constant 0 : index
    %3 = vector.load %arg7[%c0, %c0_1] : memref<160x128xf32, #tpu.memory_space<vmem>>, vector<160x128xf32>
    %c0_2 = arith.constant 0 : index
    %c0_3 = arith.constant 0 : index
    %4 = vector.load %arg3[%c0_2, %c0_3] : memref<160x32xf32, #tpu.memory_space<vmem>>, vector<160x32xf32>
    %5 = arith.truncf %4 : vector<160x32xf32> to vector<160x32xbf16>
    %c0_4 = arith.constant 0 : index
    %c0_5 = arith.constant 0 : index
    %6 = vector.load %arg4[%c0_4, %c0_5] : memref<32x128xbf16, #tpu.memory_space<vmem>>, vector<32x128xbf16>
    %cst = arith.constant dense<0.000000e+00> : vector<160x128xf32>
    %7 = tpu.matmul %5, %6, %cst {dimension_numbers = #tpu.dot_dimension_numbers<[1], [0], [0], [1], [0, 0, 1, 1], [], []>} : vector<160x32xbf16>, vector<32x128xbf16>, vector<160x128xf32> -> vector<160x128xf32>
    %8 = arith.addf %3, %7 : vector<160x128xf32>
    %c0_6 = arith.constant 0 : index
    %c0_7 = arith.constant 0 : index
    %9 = vector.load %arg7[%c0_6, %c0_7] : memref<160x128xf32, #tpu.memory_space<vmem>>, vector<160x128xf32>
    tpu.vector_store %arg7[%c0_6, %c0_7], %8 {strides = array<i32>} : memref<160x128xf32, #tpu.memory_space<vmem>>, vector<160x128xf32>,
    %c0_i32_8 = arith.constant 0 : i32
    %10 = arith.cmpi eq, %arg2, %c0_i32_8 : i32
    %11 = arith.extui %10 : i1 to i32
    %c0_i32_9 = arith.constant 0 : i32
    %12 = arith.cmpi ne, %11, %c0_i32_9 : i32
    scf.if %12 {
      %c0_10 = arith.constant 0 : index
      %c0_11 = arith.constant 0 : index
      %13 = vector.load %arg7[%c0_10, %c0_11] : memref<160x128xf32, #tpu.memory_space<vmem>>, vector<160x128xf32>
      %c0_12 = arith.constant 0 : index
      %c0_13 = arith.constant 0 : index
      %14 = vector.load %arg5[%c0_12, %c0_13] : memref<1x128xf32, #tpu.memory_space<vmem>>, vector<1x128xf32>
      %15 = vector.broadcast %14 : vector<1x128xf32> to vector<160x128xf32>
      %16 = arith.addf %13, %15 : vector<160x128xf32>
      %c0_14 = arith.constant 0 : index
      %c0_15 = arith.constant 0 : index
      %17 = vector.load %arg6[%c0_14, %c0_15] : memref<160x128xf32, #tpu.memory_space<vmem>>, vector<160x128xf32>
      tpu.vector_store %arg6[%c0_14, %c0_15], %16 {strides = array<i32>} : memref<160x128xf32, #tpu.memory_space<vmem>>, vector<160x128xf32>,
    } else {
    }
    return
  }
  func.func @transform_0(%arg0: i32, %arg1: i32, %arg2: i32) -> (i32, i32) {
    %c0_i32 = arith.constant 0 : i32
    return %arg0, %arg2 : i32, i32
  }
  func.func @transform_1(%arg0: i32, %arg1: i32, %arg2: i32) -> (i32, i32) {
    %c0_i32 = arith.constant 0 : i32
    return %arg2, %arg1 : i32, i32
  }
  func.func @transform_2(%arg0: i32, %arg1: i32, %arg2: i32) -> (i32, i32) {
    %c0_i32 = arith.constant 0 : i32
    %c0_i32_0 = arith.constant 0 : i32
    return %c0_i32, %arg1 : i32, i32
  }
  func.func @transform_3(%arg0: i32, %arg1: i32, %arg2: i32) -> (i32, i32) {
    %c0_i32 = arith.constant 0 : i32
    return %arg0, %arg1 : i32, i32
  }
}

module attributes {stable_mosaic.version = 11 : i64} {
  func.func @_post_kernel(%arg0: i32, %arg1: memref<160x32xf32, #tpu.memory_space<vmem>>, %arg2: memref<160x32xf32, #tpu.memory_space<vmem>>, %arg3: memref<1x32xf32, #tpu.memory_space<vmem>>, %arg4: memref<1x32xf32, #tpu.memory_space<vmem>>, %arg5: memref<32x64xbf16, #tpu.memory_space<vmem>>, %arg6: memref<1x64xf32, #tpu.memory_space<vmem>>, %arg7: memref<64x32xbf16, #tpu.memory_space<vmem>>, %arg8: memref<1x32xf32, #tpu.memory_space<vmem>>, %arg9: memref<1x32xf32, #tpu.memory_space<vmem>>, %arg10: memref<1x32xf32, #tpu.memory_space<vmem>>, %arg11: memref<160x32xf32, #tpu.memory_space<vmem>>) attributes {dimension_semantics = [#tpu.dimension_semantics<parallel>], iteration_bounds = array<i64: 1>, scalar_prefetch = 0 : i64, scratch_operands = 0 : i64, tpu.core_type = #tpu.core_type<tc>, window_params = [{transform_indices = @transform_0, window_bounds = array<i64: 160, 32>}, {transform_indices = @transform_1, window_bounds = array<i64: 160, 32>}, {pipeline_mode = #tpu.pipeline_mode<synchronous>, transform_indices = @transform_2, window_bounds = array<i64: 1, 32>}, {pipeline_mode = #tpu.pipeline_mode<synchronous>, transform_indices = @transform_3, window_bounds = array<i64: 1, 32>}, {pipeline_mode = #tpu.pipeline_mode<synchronous>, transform_indices = @transform_4, window_bounds = array<i64: 32, 64>}, {pipeline_mode = #tpu.pipeline_mode<synchronous>, transform_indices = @transform_5, window_bounds = array<i64: 1, 64>}, {pipeline_mode = #tpu.pipeline_mode<synchronous>, transform_indices = @transform_6, window_bounds = array<i64: 64, 32>}, {pipeline_mode = #tpu.pipeline_mode<synchronous>, transform_indices = @transform_7, window_bounds = array<i64: 1, 32>}, {pipeline_mode = #tpu.pipeline_mode<synchronous>, transform_indices = @transform_8, window_bounds = array<i64: 1, 32>}, {pipeline_mode = #tpu.pipeline_mode<synchronous>, transform_indices = @transform_9, window_bounds = array<i64: 1, 32>}, {transform_indices = @transform_10, window_bounds = array<i64: 160, 32>}]} {
    %c0 = arith.constant 0 : index
    %c0_0 = arith.constant 0 : index
    %0 = vector.load %arg1[%c0, %c0_0] : memref<160x32xf32, #tpu.memory_space<vmem>>, vector<160x32xf32>
    %c0_1 = arith.constant 0 : index
    %c0_2 = arith.constant 0 : index
    %1 = vector.load %arg2[%c0_1, %c0_2] : memref<160x32xf32, #tpu.memory_space<vmem>>, vector<160x32xf32>
    %2 = arith.addf %0, %1 : vector<160x32xf32>
    %cst = arith.constant dense<0.000000e+00> : vector<160xf32>
    %3 = vector.multi_reduction <add>, %2, %cst [1] : vector<160x32xf32> to vector<160xf32>
    %4 = vector.shape_cast %3 : vector<160xf32> to vector<160x1xf32>
    %cst_3 = arith.constant 3.200000e+01 : f32
    %5 = vector.broadcast %cst_3 : f32 to vector<160x1xf32>
    %6 = arith.divf %4, %5 : vector<160x1xf32>
    %7 = vector.broadcast %6 : vector<160x1xf32> to vector<160x32xf32>
    %8 = arith.subf %2, %7 : vector<160x32xf32>
    %9 = arith.mulf %8, %8 : vector<160x32xf32>
    %cst_4 = arith.constant dense<0.000000e+00> : vector<160xf32>
    %10 = vector.multi_reduction <add>, %9, %cst_4 [1] : vector<160x32xf32> to vector<160xf32>
    %11 = vector.shape_cast %10 : vector<160xf32> to vector<160x1xf32>
    %cst_5 = arith.constant 3.200000e+01 : f32
    %12 = vector.broadcast %cst_5 : f32 to vector<160x1xf32>
    %13 = arith.divf %11, %12 : vector<160x1xf32>
    %14 = vector.broadcast %6 : vector<160x1xf32> to vector<160x32xf32>
    %15 = arith.subf %2, %14 : vector<160x32xf32>
    %cst_6 = arith.constant 9.99999974E-6 : f32
    %16 = vector.broadcast %cst_6 : f32 to vector<160x1xf32>
    %17 = arith.addf %13, %16 : vector<160x1xf32>
    %18 = math.rsqrt %17 : vector<160x1xf32>
    %19 = vector.broadcast %18 : vector<160x1xf32> to vector<160x32xf32>
    %20 = arith.mulf %15, %19 : vector<160x32xf32>
    %c0_7 = arith.constant 0 : index
    %c0_8 = arith.constant 0 : index
    %21 = vector.load %arg3[%c0_7, %c0_8] : memref<1x32xf32, #tpu.memory_space<vmem>>, vector<1x32xf32>
    %22 = vector.broadcast %21 : vector<1x32xf32> to vector<160x32xf32>
    %23 = arith.mulf %20, %22 : vector<160x32xf32>
    %c0_9 = arith.constant 0 : index
    %c0_10 = arith.constant 0 : index
    %24 = vector.load %arg4[%c0_9, %c0_10] : memref<1x32xf32, #tpu.memory_space<vmem>>, vector<1x32xf32>
    %25 = vector.broadcast %24 : vector<1x32xf32> to vector<160x32xf32>
    %26 = arith.addf %23, %25 : vector<160x32xf32>
    %27 = arith.truncf %26 : vector<160x32xf32> to vector<160x32xbf16>
    %c0_11 = arith.constant 0 : index
    %c0_12 = arith.constant 0 : index
    %28 = vector.load %arg5[%c0_11, %c0_12] : memref<32x64xbf16, #tpu.memory_space<vmem>>, vector<32x64xbf16>
    %cst_13 = arith.constant dense<0.000000e+00> : vector<160x64xf32>
    %29 = tpu.matmul %27, %28, %cst_13 {dimension_numbers = #tpu.dot_dimension_numbers<[1], [0], [0], [1], [0, 0, 1, 1], [], []>} : vector<160x32xbf16>, vector<32x64xbf16>, vector<160x64xf32> -> vector<160x64xf32>
    %c0_14 = arith.constant 0 : index
    %c0_15 = arith.constant 0 : index
    %30 = vector.load %arg6[%c0_14, %c0_15] : memref<1x64xf32, #tpu.memory_space<vmem>>, vector<1x64xf32>
    %31 = vector.broadcast %30 : vector<1x64xf32> to vector<160x64xf32>
    %32 = arith.addf %29, %31 : vector<160x64xf32>
    %cst_16 = arith.constant 0.000000e+00 : f32
    %33 = vector.broadcast %cst_16 : f32 to vector<160x64xf32>
    %34 = arith.maximumf %32, %33 : vector<160x64xf32>
    %35 = arith.truncf %34 : vector<160x64xf32> to vector<160x64xbf16>
    %c0_17 = arith.constant 0 : index
    %c0_18 = arith.constant 0 : index
    %36 = vector.load %arg7[%c0_17, %c0_18] : memref<64x32xbf16, #tpu.memory_space<vmem>>, vector<64x32xbf16>
    %cst_19 = arith.constant dense<0.000000e+00> : vector<160x32xf32>
    %37 = tpu.matmul %35, %36, %cst_19 {dimension_numbers = #tpu.dot_dimension_numbers<[1], [0], [0], [1], [0, 0, 1, 1], [], []>} : vector<160x64xbf16>, vector<64x32xbf16>, vector<160x32xf32> -> vector<160x32xf32>
    %c0_20 = arith.constant 0 : index
    %c0_21 = arith.constant 0 : index
    %38 = vector.load %arg8[%c0_20, %c0_21] : memref<1x32xf32, #tpu.memory_space<vmem>>, vector<1x32xf32>
    %39 = vector.broadcast %38 : vector<1x32xf32> to vector<160x32xf32>
    %40 = arith.addf %37, %39 : vector<160x32xf32>
    %41 = arith.addf %26, %40 : vector<160x32xf32>
    %cst_22 = arith.constant dense<0.000000e+00> : vector<160xf32>
    %42 = vector.multi_reduction <add>, %41, %cst_22 [1] : vector<160x32xf32> to vector<160xf32>
    %43 = vector.shape_cast %42 : vector<160xf32> to vector<160x1xf32>
    %cst_23 = arith.constant 3.200000e+01 : f32
    %44 = vector.broadcast %cst_23 : f32 to vector<160x1xf32>
    %45 = arith.divf %43, %44 : vector<160x1xf32>
    %46 = vector.broadcast %45 : vector<160x1xf32> to vector<160x32xf32>
    %47 = arith.subf %41, %46 : vector<160x32xf32>
    %48 = arith.mulf %47, %47 : vector<160x32xf32>
    %cst_24 = arith.constant dense<0.000000e+00> : vector<160xf32>
    %49 = vector.multi_reduction <add>, %48, %cst_24 [1] : vector<160x32xf32> to vector<160xf32>
    %50 = vector.shape_cast %49 : vector<160xf32> to vector<160x1xf32>
    %cst_25 = arith.constant 3.200000e+01 : f32
    %51 = vector.broadcast %cst_25 : f32 to vector<160x1xf32>
    %52 = arith.divf %50, %51 : vector<160x1xf32>
    %53 = vector.broadcast %45 : vector<160x1xf32> to vector<160x32xf32>
    %54 = arith.subf %41, %53 : vector<160x32xf32>
    %cst_26 = arith.constant 9.99999974E-6 : f32
    %55 = vector.broadcast %cst_26 : f32 to vector<160x1xf32>
    %56 = arith.addf %52, %55 : vector<160x1xf32>
    %57 = math.rsqrt %56 : vector<160x1xf32>
    %58 = vector.broadcast %57 : vector<160x1xf32> to vector<160x32xf32>
    %59 = arith.mulf %54, %58 : vector<160x32xf32>
    %c0_27 = arith.constant 0 : index
    %c0_28 = arith.constant 0 : index
    %60 = vector.load %arg9[%c0_27, %c0_28] : memref<1x32xf32, #tpu.memory_space<vmem>>, vector<1x32xf32>
    %61 = vector.broadcast %60 : vector<1x32xf32> to vector<160x32xf32>
    %62 = arith.mulf %59, %61 : vector<160x32xf32>
    %c0_29 = arith.constant 0 : index
    %c0_30 = arith.constant 0 : index
    %63 = vector.load %arg10[%c0_29, %c0_30] : memref<1x32xf32, #tpu.memory_space<vmem>>, vector<1x32xf32>
    %64 = vector.broadcast %63 : vector<1x32xf32> to vector<160x32xf32>
    %65 = arith.addf %62, %64 : vector<160x32xf32>
    %c0_31 = arith.constant 0 : index
    %c0_32 = arith.constant 0 : index
    %66 = vector.load %arg11[%c0_31, %c0_32] : memref<160x32xf32, #tpu.memory_space<vmem>>, vector<160x32xf32>
    tpu.vector_store %arg11[%c0_31, %c0_32], %65 {strides = array<i32>} : memref<160x32xf32, #tpu.memory_space<vmem>>, vector<160x32xf32>,
    return
  }
  func.func @transform_0(%arg0: i32) -> (i32, i32) {
    %c0_i32 = arith.constant 0 : i32
    %c0_i32_0 = arith.constant 0 : i32
    return %arg0, %c0_i32 : i32, i32
  }
  func.func @transform_1(%arg0: i32) -> (i32, i32) {
    %c0_i32 = arith.constant 0 : i32
    %c0_i32_0 = arith.constant 0 : i32
    return %arg0, %c0_i32 : i32, i32
  }
  func.func @transform_2(%arg0: i32) -> (i32, i32) {
    %c0_i32 = arith.constant 0 : i32
    %c0_i32_0 = arith.constant 0 : i32
    %c0_i32_1 = arith.constant 0 : i32
    return %c0_i32, %c0_i32_0 : i32, i32
  }
  func.func @transform_3(%arg0: i32) -> (i32, i32) {
    %c0_i32 = arith.constant 0 : i32
    %c0_i32_0 = arith.constant 0 : i32
    %c0_i32_1 = arith.constant 0 : i32
    return %c0_i32, %c0_i32_0 : i32, i32
  }
  func.func @transform_4(%arg0: i32) -> (i32, i32) {
    %c0_i32 = arith.constant 0 : i32
    %c0_i32_0 = arith.constant 0 : i32
    %c0_i32_1 = arith.constant 0 : i32
    return %c0_i32, %c0_i32_0 : i32, i32
  }
  func.func @transform_5(%arg0: i32) -> (i32, i32) {
    %c0_i32 = arith.constant 0 : i32
    %c0_i32_0 = arith.constant 0 : i32
    %c0_i32_1 = arith.constant 0 : i32
    return %c0_i32, %c0_i32_0 : i32, i32
  }
  func.func @transform_6(%arg0: i32) -> (i32, i32) {
    %c0_i32 = arith.constant 0 : i32
    %c0_i32_0 = arith.constant 0 : i32
    %c0_i32_1 = arith.constant 0 : i32
    return %c0_i32, %c0_i32_0 : i32, i32
  }
  func.func @transform_7(%arg0: i32) -> (i32, i32) {
    %c0_i32 = arith.constant 0 : i32
    %c0_i32_0 = arith.constant 0 : i32
    %c0_i32_1 = arith.constant 0 : i32
    return %c0_i32, %c0_i32_0 : i32, i32
  }
  func.func @transform_8(%arg0: i32) -> (i32, i32) {
    %c0_i32 = arith.constant 0 : i32
    %c0_i32_0 = arith.constant 0 : i32
    %c0_i32_1 = arith.constant 0 : i32
    return %c0_i32, %c0_i32_0 : i32, i32
  }
  func.func @transform_9(%arg0: i32) -> (i32, i32) {
    %c0_i32 = arith.constant 0 : i32
    %c0_i32_0 = arith.constant 0 : i32
    %c0_i32_1 = arith.constant 0 : i32
    return %c0_i32, %c0_i32_0 : i32, i32
  }
  func.func @transform_10(%arg0: i32) -> (i32, i32) {
    %c0_i32 = arith.constant 0 : i32
    %c0_i32_0 = arith.constant 0 : i32
    return %arg0, %c0_i32 : i32, i32
  }
}

</mosaic_0001>

<llo_original>
// kernel: encoder_layer_forward.4
$region0: #{encoder_layer_forward.4}
  #allocation0 [shape = 'u32[]', space=smem, size = 0x4, offset = 0x4, fixed_abs, tag = 'smem constant byte address 0x4 - core index']
  #allocation1 [shape = 'u32[72,128]{1,0:T(1,128)}', space=vmem, size = 0x9000, scoped, tag = 'internal scratch']
  #allocation2 [shape = 'f32[160,128]{1,0:T(8,128)}', space=vmem, size = 0x14000, scoped, tag = 'scratch operand']
  %s0 = inlined_call_operand.vmem [shape: f32[160,32], index: 0, kind: input, shape index: {}]
  %s1 = inlined_call_operand.hbm [shape: bf16[32,128], index: 1, kind: input, shape index: {}]
  %s2 = inlined_call_operand.vmem [shape: f32[1,128], index: 2, kind: input, shape index: {}]
  %s3 = inlined_call_operand.vmem [shape: bf16[160,128], index: 3, kind: output, shape index: {}]
  %s4 = sld [smem:[#allocation0]]
  $region34: #{encoder_layer_forward.4} parent=0
    _
  %s6 = ssub.s32 1, %s4
  %s7 = scalar_select 0, %s6, %s4
  $region1: #{encoder_layer_forward.4} parent=0
    #allocation3 [shape = 'u8[8192]{0}', space=vmem, size = 0x2000, scoped, tag = 'input window, operand 1, single buffered']
    #allocation4 [shape = 's32[1]{0}', space=sflag, size = 0x4, scoped, tag = 'scoped memory for encoder_layer_forward.4']
    %8 = vsyncpa [#allocation4], 0
    // Predicated region
    $region2: #{encoder_layer_forward.4} parent=1 // pred_check
      _
    $region3: #{encoder_layer_forward.4} parent=1 // pred_check_branch
      %10 = sbr.rel (0) target = $region5
    $region4: #{encoder_layer_forward.4} parent=1 // pred_region
      _
    $region5: #{encoder_layer_forward.4} parent=1 // pred_fallthru
      _
    // Predicated region
    $region6: #{encoder_layer_forward.4} parent=1 // pred_check
      _
    $region7: #{encoder_layer_forward.4} parent=1 // pred_check_branch
      %12 = sbr.rel (0) target = $region9
    $region8: #{encoder_layer_forward.4} parent=1 // pred_region
      %14 = vsyncadd [#allocation4], 0
      %s15 = sshll.u32 %s1, 4
      %s16 = int_to_ptr.hbm [resolvable:$true] %s15
      %s17 = sshll.u32 [#allocation3], 4
      %s18 = int_to_ptr.vmem [resolvable:$true] %s17
      %23 = dma.hbm_to_vmem [thread:$0]  %s16, 256, %s18, [#allocation4], 64, 64, 4
    $region9: #{encoder_layer_forward.4} parent=1 // pred_fallthru
      _
    // Predicated region
    $region10: #{encoder_layer_forward.4} parent=1 // pred_check
      _
    $region11: #{encoder_layer_forward.4} parent=1 // pred_check_branch
      %25 = sbr.rel (0) target = $region13
    $region12: #{encoder_layer_forward.4} parent=1 // pred_region
      _
    $region13: #{encoder_layer_forward.4} parent=1 // pred_fallthru
      _
    // Predicated region
    $region14: #{encoder_layer_forward.4} parent=1 // pred_check
      _
    $region15: #{encoder_layer_forward.4} parent=1 // pred_check_branch
      %27 = sbr.rel (0) target = $region17
    $region16: #{encoder_layer_forward.4} parent=1 // pred_region
      %29 = dma.done [#allocation4], 256
    $region17: #{encoder_layer_forward.4} parent=1 // pred_fallthru
      _
    %p31 = scmp.eq.s32.totalorder 0, 0
    // Predicated region
    $region18: #{encoder_layer_forward.4} parent=1 // pred_check
      %p32 = pneg %p31
    $region19: #{encoder_layer_forward.4} parent=1 // pred_check_branch
      %34 = sbr.rel (%p32) target = $region21
    $region20: #{encoder_layer_forward.4} parent=1 // pred_region
      %35 = vst [vmem:[#allocation2] sm:$0xff] 0.0
      %36 = vst [vmem:[#allocation2 + $0x8] sm:$0xff] 0.0
      %37 = vst [vmem:[#allocation2 + $0x10] sm:$0xff] 0.0
      %38 = vst [vmem:[#allocation2 + $0x18] sm:$0xff] 0.0
      %39 = vst [vmem:[#allocation2 + $0x20] sm:$0xff] 0.0
      %40 = vst [vmem:[#allocation2 + $0x28] sm:$0xff] 0.0
      %41 = vst [vmem:[#allocation2 + $0x30] sm:$0xff] 0.0
      %42 = vst [vmem:[#allocation2 + $0x38] sm:$0xff] 0.0
      %43 = vst [vmem:[#allocation2 + $0x40] sm:$0xff] 0.0
      %44 = vst [vmem:[#allocation2 + $0x48] sm:$0xff] 0.0
      %45 = vst [vmem:[#allocation2 + $0x50] sm:$0xff] 0.0
      %46 = vst [vmem:[#allocation2 + $0x58] sm:$0xff] 0.0
      %47 = vst [vmem:[#allocation2 + $0x60] sm:$0xff] 0.0
      %48 = vst [vmem:[#allocation2 + $0x68] sm:$0xff] 0.0
      %49 = vst [vmem:[#allocation2 + $0x70] sm:$0xff] 0.0
      %50 = vst [vmem:[#allocation2 + $0x78] sm:$0xff] 0.0
      %51 = vst [vmem:[#allocation2 + $0x80] sm:$0xff] 0.0
      %52 = vst [vmem:[#allocation2 + $0x88] sm:$0xff] 0.0
      %53 = vst [vmem:[#allocation2 + $0x90] sm:$0xff] 0.0
      %54 = vst [vmem:[#allocation2 + $0x98] sm:$0xff] 0.0
    $region21: #{encoder_layer_forward.4} parent=1 // pred_fallthru
      _
    %v55 = vld [vmem:[#allocation2] sm:$0xff]
    %v56 = vld [vmem:[#allocation2 + $0x8] sm:$0xff]
    %v57 = vld [vmem:[#allocation2 + $0x10] sm:$0xff]
    %v58 = vld [vmem:[#allocation2 + $0x18] sm:$0xff]
    %v59 = vld [vmem:[#allocation2 + $0x20] sm:$0xff]
    %v60 = vld [vmem:[#allocation2 + $0x28] sm:$0xff]
    %v61 = vld [vmem:[#allocation2 + $0x30] sm:$0xff]
    %v62 = vld [vmem:[#allocation2 + $0x38] sm:$0xff]
    %v63 = vld [vmem:[#allocation2 + $0x40] sm:$0xff]
    %v64 = vld [vmem:[#allocation2 + $0x48] sm:$0xff]
    %v65 = vld [vmem:[#allocation2 + $0x50] sm:$0xff]
    %v66 = vld [vmem:[#allocation2 + $0x58] sm:$0xff]
    %v67 = vld [vmem:[#allocation2 + $0x60] sm:$0xff]
    %v68 = vld [vmem:[#allocation2 + $0x68] sm:$0xff]
    %v69 = vld [vmem:[#allocation2 + $0x70] sm:$0xff]
    %v70 = vld [vmem:[#allocation2 + $0x78] sm:$0xff]
    %v71 = vld [vmem:[#allocation2 + $0x80] sm:$0xff]
    %v72 = vld [vmem:[#allocation2 + $0x88] sm:$0xff]
    %v73 = vld [vmem:[#allocation2 + $0x90] sm:$0xff]
    %v74 = vld [vmem:[#allocation2 + $0x98] sm:$0xff]
    %v75 = vld [vmem:[%s0] sm:$0xff]
    %v76 = vld [vmem:[%s0 + $0x8] sm:$0xff]
    %v77 = vld [vmem:[%s0 + $0x10] sm:$0xff]
    %v78 = vld [vmem:[%s0 + $0x18] sm:$0xff]
    %v79 = vld [vmem:[%s0 + $0x20] sm:$0xff]
    %v80 = vld [vmem:[%s0 + $0x28] sm:$0xff]
    %v81 = vld [vmem:[%s0 + $0x30] sm:$0xff]
    %v82 = vld [vmem:[%s0 + $0x38] sm:$0xff]
    %v83 = vld [vmem:[%s0 + $0x40] sm:$0xff]
    %v84 = vld [vmem:[%s0 + $0x48] sm:$0xff]
    %v85 = vld [vmem:[%s0 + $0x50] sm:$0xff]
    %v86 = vld [vmem:[%s0 + $0x58] sm:$0xff]
    %v87 = vld [vmem:[%s0 + $0x60] sm:$0xff]
    %v88 = vld [vmem:[%s0 + $0x68] sm:$0xff]
    %v89 = vld [vmem:[%s0 + $0x70] sm:$0xff]
    %v90 = vld [vmem:[%s0 + $0x78] sm:$0xff]
    %v91 = vld [vmem:[%s0 + $0x80] sm:$0xff]
    %v92 = vld [vmem:[%s0 + $0x88] sm:$0xff]
    %v93 = vld [vmem:[%s0 + $0x90] sm:$0xff]
    %v94 = vld [vmem:[%s0 + $0x98] sm:$0xff]
    %v95 = vpack.c.bf16 %v76, %v75
    %v96 = vpack.c.bf16 %v78, %v77
    %v97 = vpack.c.bf16 %v80, %v79
    %v98 = vpack.c.bf16 %v82, %v81
    %v99 = vpack.c.bf16 %v84, %v83
    %v100 = vpack.c.bf16 %v86, %v85
    %v101 = vpack.c.bf16 %v88, %v87
    %v102 = vpack.c.bf16 %v90, %v89
    %v103 = vpack.c.bf16 %v92, %v91
    %v104 = vpack.c.bf16 %v94, %v93
    %v105 = vld [vmem:[#allocation3] sm:$0xf]
    %v106 = vld [vmem:[#allocation3 + $0x4] sm:$0xf]
    %v107 = vld [vmem:[#allocation3 + $0x8] sm:$0xf]
    %v108 = vld [vmem:[#allocation3 + $0xc] sm:$0xf]
    %v113 = vunpack.c.l.b16 %v105
    %v114 = vunpack.c.l.b16 %v106
    %v115 = vunpack.c.l.b16 %v107
    %v116 = vunpack.c.l.b16 %v108
    %v117 = vpack.c.b16 %v114, %v113
    %v118 = vpack.c.b16 %v116, %v115
    %vm121 = vcmask 261120
    %v123 = vsel %vm121, %v95, 0
    %v126 = vsel %vm121, %v96, 0
    %v129 = vsel %vm121, %v97, 0
    %v132 = vsel %vm121, %v98, 0
    %v135 = vsel %vm121, %v99, 0
    %v138 = vsel %vm121, %v100, 0
    %v141 = vsel %vm121, %v101, 0
    %v144 = vsel %vm121, %v102, 0
    %v147 = vsel %vm121, %v103, 0
    %v150 = vsel %vm121, %v104, 0
    %152 = vmatpush.bf16.msra.mxu0 0
    %153 = vmatpush.bf16.msra.mxu0 0
    %154 = vmatpush.bf16.msra.mxu0 0
    %155 = vmatpush.bf16.msra.mxu0 0
    %156 = vmatpush.bf16.msra.mxu0 0
    %157 = vmatpush.bf16.msra.mxu0 0
    %158 = vmatpush.bf16.msra.mxu0 %v118
    %159 = vmatpush.bf16.msra.mxu0 %v117
    %160 = vmatmul.bf16.gmra.mxu0 %v123
    %v161 = vpop.f32.mrf.mxu0
    %v162 = vadd.f32 0.0, %v161
    %v163 = vpop.f32.mrf.mxu0
    %v164 = vadd.f32 0.0, %v163
    %165 = vmatmul.bf16.gmra.mxu0 %v126
    %v166 = vpop.f32.mrf.mxu0
    %v167 = vadd.f32 0.0, %v166
    %v168 = vpop.f32.mrf.mxu0
    %v169 = vadd.f32 0.0, %v168
    %170 = vmatmul.bf16.gmra.mxu0 %v129
    %v171 = vpop.f32.mrf.mxu0
    %v172 = vadd.f32 0.0, %v171
    %v173 = vpop.f32.mrf.mxu0
    %v174 = vadd.f32 0.0, %v173
    %175 = vmatmul.bf16.gmra.mxu0 %v132
    %v176 = vpop.f32.mrf.mxu0
    %v177 = vadd.f32 0.0, %v176
    %v178 = vpop.f32.mrf.mxu0
    %v179 = vadd.f32 0.0, %v178
    %180 = vmatmul.bf16.gmra.mxu0 %v135
    %v181 = vpop.f32.mrf.mxu0
    %v182 = vadd.f32 0.0, %v181
    %v183 = vpop.f32.mrf.mxu0
    %v184 = vadd.f32 0.0, %v183
    %185 = vmatmul.bf16.gmra.mxu0 %v138
    %v186 = vpop.f32.mrf.mxu0
    %v187 = vadd.f32 0.0, %v186
    %v188 = vpop.f32.mrf.mxu0
    %v189 = vadd.f32 0.0, %v188
    %190 = vmatmul.bf16.gmra.mxu0 %v141
    %v191 = vpop.f32.mrf.mxu0
    %v192 = vadd.f32 0.0, %v191
    %v193 = vpop.f32.mrf.mxu0
    %v194 = vadd.f32 0.0, %v193
    %195 = vmatmul.bf16.gmra.mxu0 %v144
    %v196 = vpop.f32.mrf.mxu0
    %v197 = vadd.f32 0.0, %v196
    %v198 = vpop.f32.mrf.mxu0
    %v199 = vadd.f32 0.0, %v198
    %200 = vmatmul.bf16.gmra.mxu0 %v147
    %v201 = vpop.f32.mrf.mxu0
    %v202 = vadd.f32 0.0, %v201
    %v203 = vpop.f32.mrf.mxu0
    %v204 = vadd.f32 0.0, %v203
    %205 = vmatmul.bf16.gmra.mxu0 %v150
    %v206 = vpop.f32.mrf.mxu0
    %v207 = vadd.f32 0.0, %v206
    %v208 = vpop.f32.mrf.mxu0
    %v209 = vadd.f32 0.0, %v208
    %210 = vdwg.mxu0
    %v211 = vadd.f32 %v55, %v162
    %v212 = vadd.f32 %v56, %v164
    %v213 = vadd.f32 %v57, %v167
    %v214 = vadd.f32 %v58, %v169
    %v215 = vadd.f32 %v59, %v172
    %v216 = vadd.f32 %v60, %v174
    %v217 = vadd.f32 %v61, %v177
    %v218 = vadd.f32 %v62, %v179
    %v219 = vadd.f32 %v63, %v182
    %v220 = vadd.f32 %v64, %v184
    %v221 = vadd.f32 %v65, %v187
    %v222 = vadd.f32 %v66, %v189
    %v223 = vadd.f32 %v67, %v192
    %v224 = vadd.f32 %v68, %v194
    %v225 = vadd.f32 %v69, %v197
    %v226 = vadd.f32 %v70, %v199
    %v227 = vadd.f32 %v71, %v202
    %v228 = vadd.f32 %v72, %v204
    %v229 = vadd.f32 %v73, %v207
    %v230 = vadd.f32 %v74, %v209
    %231 = vst [vmem:[#allocation2] sm:$0xff] %v211
    %232 = vst [vmem:[#allocation2 + $0x8] sm:$0xff] %v212
    %233 = vst [vmem:[#allocation2 + $0x10] sm:$0xff] %v213
    %234 = vst [vmem:[#allocation2 + $0x18] sm:$0xff] %v214
    %235 = vst [vmem:[#allocation2 + $0x20] sm:$0xff] %v215
    %236 = vst [vmem:[#allocation2 + $0x28] sm:$0xff] %v216
    %237 = vst [vmem:[#allocation2 + $0x30] sm:$0xff] %v217
    %238 = vst [vmem:[#allocation2 + $0x38] sm:$0xff] %v218
    %239 = vst [vmem:[#allocation2 + $0x40] sm:$0xff] %v219
    %240 = vst [vmem:[#allocation2 + $0x48] sm:$0xff] %v220
    %241 = vst [vmem:[#allocation2 + $0x50] sm:$0xff] %v221
    %242 = vst [vmem:[#allocation2 + $0x58] sm:$0xff] %v222
    %243 = vst [vmem:[#allocation2 + $0x60] sm:$0xff] %v223
    %244 = vst [vmem:[#allocation2 + $0x68] sm:$0xff] %v224
    %245 = vst [vmem:[#allocation2 + $0x70] sm:$0xff] %v225
    %246 = vst [vmem:[#allocation2 + $0x78] sm:$0xff] %v226
    %247 = vst [vmem:[#allocation2 + $0x80] sm:$0xff] %v227
    %248 = vst [vmem:[#allocation2 + $0x88] sm:$0xff] %v228
    %249 = vst [vmem:[#allocation2 + $0x90] sm:$0xff] %v229
    %250 = vst [vmem:[#allocation2 + $0x98] sm:$0xff] %v230
    // Predicated region
    $region22: #{encoder_layer_forward.4} parent=1 // pred_check
      %p251 = pneg %p31
    $region23: #{encoder_layer_forward.4} parent=1 // pred_check_branch
      %253 = sbr.rel (%p251) target = $region25
    $region24: #{encoder_layer_forward.4} parent=1 // pred_region
      %v254 = vld [vmem:[#allocation2] sm:$0xff]
      %v255 = vld [vmem:[#allocation2 + $0x8] sm:$0xff]
      %v256 = vld [vmem:[#allocation2 + $0x10] sm:$0xff]
      %v257 = vld [vmem:[#allocation2 + $0x18] sm:$0xff]
      %v258 = vld [vmem:[#allocation2 + $0x20] sm:$0xff]
      %v259 = vld [vmem:[#allocation2 + $0x28] sm:$0xff]
      %v260 = vld [vmem:[#allocation2 + $0x30] sm:$0xff]
      %v261 = vld [vmem:[#allocation2 + $0x38] sm:$0xff]
      %v262 = vld [vmem:[#allocation2 + $0x40] sm:$0xff]
      %v263 = vld [vmem:[#allocation2 + $0x48] sm:$0xff]
      %v264 = vld [vmem:[#allocation2 + $0x50] sm:$0xff]
      %v265 = vld [vmem:[#allocation2 + $0x58] sm:$0xff]
      %v266 = vld [vmem:[#allocation2 + $0x60] sm:$0xff]
      %v267 = vld [vmem:[#allocation2 + $0x68] sm:$0xff]
      %v268 = vld [vmem:[#allocation2 + $0x70] sm:$0xff]
      %v269 = vld [vmem:[#allocation2 + $0x78] sm:$0xff]
      %v270 = vld [vmem:[#allocation2 + $0x80] sm:$0xff]
      %v271 = vld [vmem:[#allocation2 + $0x88] sm:$0xff]
      %v272 = vld [vmem:[#allocation2 + $0x90] sm:$0xff]
      %v273 = vld [vmem:[#allocation2 + $0x98] sm:$0xff]
      %v274 = vld [vmem:[%s2] sm:$0x1]
      %v276 = vperm.slane %v274, 0
      %v278 = vadd.f32 %v254, %v276
      %v279 = vadd.f32 %v255, %v276
      %v280 = vadd.f32 %v256, %v276
      %v281 = vadd.f32 %v257, %v276
      %v282 = vadd.f32 %v258, %v276
      %v283 = vadd.f32 %v259, %v276
      %v284 = vadd.f32 %v260, %v276
      %v285 = vadd.f32 %v261, %v276
      %v286 = vadd.f32 %v262, %v276
      %v287 = vadd.f32 %v263, %v276
      %v288 = vadd.f32 %v264, %v276
      %v289 = vadd.f32 %v265, %v276
      %v290 = vadd.f32 %v266, %v276
      %v291 = vadd.f32 %v267, %v276
      %v292 = vadd.f32 %v268, %v276
      %v293 = vadd.f32 %v269, %v276
      %v294 = vadd.f32 %v270, %v276
      %v295 = vadd.f32 %v271, %v276
      %v296 = vadd.f32 %v272, %v276
      %v297 = vadd.f32 %v273, %v276
      %v298 = vpack.c.bf16 %v278, %v278
      %v299 = vpack.c.bf16 %v279, %v279
      %v300 = vpack.c.bf16 %v280, %v280
      %v301 = vpack.c.bf16 %v281, %v281
      %v302 = vpack.c.bf16 %v282, %v282
      %v303 = vpack.c.bf16 %v283, %v283
      %v304 = vpack.c.bf16 %v284, %v284
      %v305 = vpack.c.bf16 %v285, %v285
      %v306 = vpack.c.bf16 %v286, %v286
      %v307 = vpack.c.bf16 %v287, %v287
      %v308 = vpack.c.bf16 %v288, %v288
      %v309 = vpack.c.bf16 %v289, %v289
      %v310 = vpack.c.bf16 %v290, %v290
      %v311 = vpack.c.bf16 %v291, %v291
      %v312 = vpack.c.bf16 %v292, %v292
      %v313 = vpack.c.bf16 %v293, %v293
      %v314 = vpack.c.bf16 %v294, %v294
      %v315 = vpack.c.bf16 %v295, %v295
      %v316 = vpack.c.bf16 %v296, %v296
      %v317 = vpack.c.bf16 %v297, %v297
      %318 = vst [vmem:[%s3] sm:$0xf] %v298
      %319 = vst [vmem:[%s3 + $0x4] sm:$0xf] %v299
      %320 = vst [vmem:[%s3 + $0x8] sm:$0xf] %v300
      %321 = vst [vmem:[%s3 + $0xc] sm:$0xf] %v301
      %322 = vst [vmem:[%s3 + $0x10] sm:$0xf] %v302
      %323 = vst [vmem:[%s3 + $0x14] sm:$0xf] %v303
      %324 = vst [vmem:[%s3 + $0x18] sm:$0xf] %v304
      %325 = vst [vmem:[%s3 + $0x1c] sm:$0xf] %v305
      %326 = vst [vmem:[%s3 + $0x20] sm:$0xf] %v306
      %327 = vst [vmem:[%s3 + $0x24] sm:$0xf] %v307
      %328 = vst [vmem:[%s3 + $0x28] sm:$0xf] %v308
      %329 = vst [vmem:[%s3 + $0x2c] sm:$0xf] %v309
      %330 = vst [vmem:[%s3 + $0x30] sm:$0xf] %v310
      %331 = vst [vmem:[%s3 + $0x34] sm:$0xf] %v311
      %332 = vst [vmem:[%s3 + $0x38] sm:$0xf] %v312
      %333 = vst [vmem:[%s3 + $0x3c] sm:$0xf] %v313
      %334 = vst [vmem:[%s3 + $0x40] sm:$0xf] %v314
      %335 = vst [vmem:[%s3 + $0x44] sm:$0xf] %v315
      %336 = vst [vmem:[%s3 + $0x48] sm:$0xf] %v316
      %337 = vst [vmem:[%s3 + $0x4c] sm:$0xf] %v317
    $region25: #{encoder_layer_forward.4} parent=1 // pred_fallthru
      _
    // Predicated region
    $region26: #{encoder_layer_forward.4} parent=1 // pred_check
      _
    $region27: #{encoder_layer_forward.4} parent=1 // pred_check_branch
      %339 = sbr.rel (0) target = $region29
    $region28: #{encoder_layer_forward.4} parent=1 // pred_region
      _
    $region29: #{encoder_layer_forward.4} parent=1 // pred_fallthru
      _
    // Predicated region
    $region30: #{encoder_layer_forward.4} parent=1 // pred_check
      _
    $region31: #{encoder_layer_forward.4} parent=1 // pred_check_branch
      %341 = sbr.rel (0) target = $region33
    $region32: #{encoder_layer_forward.4} parent=1 // pred_region
      _
    $region33: #{encoder_layer_forward.4} parent=1 // pred_fallthru
      _
    %342 = vsyncpa [#allocation4], 1

// kernel: encoder_layer_forward.5
$region0: #{encoder_layer_forward.5}
  #allocation0 [shape = 'u32[]', space=smem, size = 0x4, offset = 0x4, fixed_abs, tag = 'smem constant byte address 0x4 - core index']
  #allocation1 [shape = 'u32[72,128]{1,0:T(1,128)}', space=vmem, size = 0x9000, scoped, tag = 'internal scratch']
  #allocation2 [shape = 'f32[160,128]{1,0:T(8,128)}', space=vmem, size = 0x14000, scoped, tag = 'scratch operand']
  %s0 = inlined_call_operand.vmem [shape: f32[160,32], index: 0, kind: input, shape index: {}]
  %s1 = inlined_call_operand.hbm [shape: bf16[32,128], index: 1, kind: input, shape index: {}]
  %s2 = inlined_call_operand.hbm [shape: f32[1,128], index: 2, kind: input, shape index: {}]
  %s3 = inlined_call_operand.vmem [shape: f32[160,128], index: 3, kind: output, shape index: {}]
  %s4 = sld [smem:[#allocation0]]
  $region38: #{encoder_layer_forward.5} parent=0
    _
  %s6 = ssub.s32 1, %s4
  %s7 = scalar_select 0, %s6, %s4
  $region1: #{encoder_layer_forward.5} parent=0
    #allocation3 [shape = 'u8[8192]{0}', space=vmem, size = 0x2000, scoped, tag = 'input window, operand 1, single buffered']
    #allocation4 [shape = 's32[1]{0}', space=sflag, size = 0x4, scoped, tag = 'scoped memory for encoder_layer_forward.5']
    #allocation5 [shape = 'u8[512]{0}', space=vmem, size = 0x400, scoped, tag = 'input window, operand 2, single buffered']
    #allocation6 [shape = 's32[1]{0}', space=sflag, size = 0x4, scoped, tag = 'scoped memory for encoder_layer_forward.5']
    %8 = vsyncpa [#allocation4], 0
    %9 = vsyncpa [#allocation6], 0
    // Predicated region
    $region2: #{encoder_layer_forward.5} parent=1 // pred_check
      _
    $region3: #{encoder_layer_forward.5} parent=1 // pred_check_branch
      %11 = sbr.rel (0) target = $region5
    $region4: #{encoder_layer_forward.5} parent=1 // pred_region
      _
    $region5: #{encoder_layer_forward.5} parent=1 // pred_fallthru
      _
    // Predicated region
    $region6: #{encoder_layer_forward.5} parent=1 // pred_check
      _
    $region7: #{encoder_layer_forward.5} parent=1 // pred_check_branch
      %13 = sbr.rel (0) target = $region9
    $region8: #{encoder_layer_forward.5} parent=1 // pred_region
      %15 = vsyncadd [#allocation4], 0
      %s16 = sshll.u32 %s1, 4
      %s17 = int_to_ptr.hbm [resolvable:$true] %s16
      %s18 = sshll.u32 [#allocation3], 4
      %s19 = int_to_ptr.vmem [resolvable:$true] %s18
      %24 = dma.hbm_to_vmem [thread:$0]  %s17, 256, %s19, [#allocation4], 64, 64, 4
    $region9: #{encoder_layer_forward.5} parent=1 // pred_fallthru
      _
    // Predicated region
    $region10: #{encoder_layer_forward.5} parent=1 // pred_check
      _
    $region11: #{encoder_layer_forward.5} parent=1 // pred_check_branch
      %26 = sbr.rel (0) target = $region13
    $region12: #{encoder_layer_forward.5} parent=1 // pred_region
      %28 = vsyncadd [#allocation6], 0
      %s30 = sshll.u32 %s2, 4
      %s31 = int_to_ptr.hbm [resolvable:$true] %s30
      %s32 = sshll.u32 [#allocation5], 4
      %s33 = int_to_ptr.vmem [resolvable:$true] %s32
      %35 = dma.hbm_to_vmem [thread:$0]  %s31, 16, %s33, [#allocation6]
    $region13: #{encoder_layer_forward.5} parent=1 // pred_fallthru
      _
    // Predicated region
    $region14: #{encoder_layer_forward.5} parent=1 // pred_check
      _
    $region15: #{encoder_layer_forward.5} parent=1 // pred_check_branch
      %37 = sbr.rel (0) target = $region17
    $region16: #{encoder_layer_forward.5} parent=1 // pred_region
      %39 = dma.done [#allocation4], 256
    $region17: #{encoder_layer_forward.5} parent=1 // pred_fallthru
      _
    // Predicated region
    $region18: #{encoder_layer_forward.5} parent=1 // pred_check
      _
    $region19: #{encoder_layer_forward.5} parent=1 // pred_check_branch
      %41 = sbr.rel (0) target = $region21
    $region20: #{encoder_layer_forward.5} parent=1 // pred_region
      %43 = dma.done [#allocation6], 16
    $region21: #{encoder_layer_forward.5} parent=1 // pred_fallthru
      _
    %p45 = scmp.eq.s32.totalorder 0, 0
    // Predicated region
    $region22: #{encoder_layer_forward.5} parent=1 // pred_check
      %p46 = pneg %p45
    $region23: #{encoder_layer_forward.5} parent=1 // pred_check_branch
      %48 = sbr.rel (%p46) target = $region25
    $region24: #{encoder_layer_forward.5} parent=1 // pred_region
      %49 = vst [vmem:[#allocation2] sm:$0xff] 0.0
      %50 = vst [vmem:[#allocation2 + $0x8] sm:$0xff] 0.0
      %51 = vst [vmem:[#allocation2 + $0x10] sm:$0xff] 0.0
      %52 = vst [vmem:[#allocation2 + $0x18] sm:$0xff] 0.0
      %53 = vst [vmem:[#allocation2 + $0x20] sm:$0xff] 0.0
      %54 = vst [vmem:[#allocation2 + $0x28] sm:$0xff] 0.0
      %55 = vst [vmem:[#allocation2 + $0x30] sm:$0xff] 0.0
      %56 = vst [vmem:[#allocation2 + $0x38] sm:$0xff] 0.0
      %57 = vst [vmem:[#allocation2 + $0x40] sm:$0xff] 0.0
      %58 = vst [vmem:[#allocation2 + $0x48] sm:$0xff] 0.0
      %59 = vst [vmem:[#allocation2 + $0x50] sm:$0xff] 0.0
      %60 = vst [vmem:[#allocation2 + $0x58] sm:$0xff] 0.0
      %61 = vst [vmem:[#allocation2 + $0x60] sm:$0xff] 0.0
      %62 = vst [vmem:[#allocation2 + $0x68] sm:$0xff] 0.0
      %63 = vst [vmem:[#allocation2 + $0x70] sm:$0xff] 0.0
      %64 = vst [vmem:[#allocation2 + $0x78] sm:$0xff] 0.0
      %65 = vst [vmem:[#allocation2 + $0x80] sm:$0xff] 0.0
      %66 = vst [vmem:[#allocation2 + $0x88] sm:$0xff] 0.0
      %67 = vst [vmem:[#allocation2 + $0x90] sm:$0xff] 0.0
      %68 = vst [vmem:[#allocation2 + $0x98] sm:$0xff] 0.0
    $region25: #{encoder_layer_forward.5} parent=1 // pred_fallthru
      _
    %v69 = vld [vmem:[#allocation2] sm:$0xff]
    %v70 = vld [vmem:[#allocation2 + $0x8] sm:$0xff]
    %v71 = vld [vmem:[#allocation2 + $0x10] sm:$0xff]
    %v72 = vld [vmem:[#allocation2 + $0x18] sm:$0xff]
    %v73 = vld [vmem:[#allocation2 + $0x20] sm:$0xff]
    %v74 = vld [vmem:[#allocation2 + $0x28] sm:$0xff]
    %v75 = vld [vmem:[#allocation2 + $0x30] sm:$0xff]
    %v76 = vld [vmem:[#allocation2 + $0x38] sm:$0xff]
    %v77 = vld [vmem:[#allocation2 + $0x40] sm:$0xff]
    %v78 = vld [vmem:[#allocation2 + $0x48] sm:$0xff]
    %v79 = vld [vmem:[#allocation2 + $0x50] sm:$0xff]
    %v80 = vld [vmem:[#allocation2 + $0x58] sm:$0xff]
    %v81 = vld [vmem:[#allocation2 + $0x60] sm:$0xff]
    %v82 = vld [vmem:[#allocation2 + $0x68] sm:$0xff]
    %v83 = vld [vmem:[#allocation2 + $0x70] sm:$0xff]
    %v84 = vld [vmem:[#allocation2 + $0x78] sm:$0xff]
    %v85 = vld [vmem:[#allocation2 + $0x80] sm:$0xff]
    %v86 = vld [vmem:[#allocation2 + $0x88] sm:$0xff]
    %v87 = vld [vmem:[#allocation2 + $0x90] sm:$0xff]
    %v88 = vld [vmem:[#allocation2 + $0x98] sm:$0xff]
    %v89 = vld [vmem:[%s0] sm:$0xff]
    %v90 = vld [vmem:[%s0 + $0x8] sm:$0xff]
    %v91 = vld [vmem:[%s0 + $0x10] sm:$0xff]
    %v92 = vld [vmem:[%s0 + $0x18] sm:$0xff]
    %v93 = vld [vmem:[%s0 + $0x20] sm:$0xff]
    %v94 = vld [vmem:[%s0 + $0x28] sm:$0xff]
    %v95 = vld [vmem:[%s0 + $0x30] sm:$0xff]
    %v96 = vld [vmem:[%s0 + $0x38] sm:$0xff]
    %v97 = vld [vmem:[%s0 + $0x40] sm:$0xff]
    %v98 = vld [vmem:[%s0 + $0x48] sm:$0xff]
    %v99 = vld [vmem:[%s0 + $0x50] sm:$0xff]
    %v100 = vld [vmem:[%s0 + $0x58] sm:$0xff]
    %v101 = vld [vmem:[%s0 + $0x60] sm:$0xff]
    %v102 = vld [vmem:[%s0 + $0x68] sm:$0xff]
    %v103 = vld [vmem:[%s0 + $0x70] sm:$0xff]
    %v104 = vld [vmem:[%s0 + $0x78] sm:$0xff]
    %v105 = vld [vmem:[%s0 + $0x80] sm:$0xff]
    %v106 = vld [vmem:[%s0 + $0x88] sm:$0xff]
    %v107 = vld [vmem:[%s0 + $0x90] sm:$0xff]
    %v108 = vld [vmem:[%s0 + $0x98] sm:$0xff]
    %v109 = vpack.c.bf16 %v90, %v89
    %v110 = vpack.c.bf16 %v92, %v91
    %v111 = vpack.c.bf16 %v94, %v93
    %v112 = vpack.c.bf16 %v96, %v95
    %v113 = vpack.c.bf16 %v98, %v97
    %v114 = vpack.c.bf16 %v100, %v99
    %v115 = vpack.c.bf16 %v102, %v101
    %v116 = vpack.c.bf16 %v104, %v103
    %v117 = vpack.c.bf16 %v106, %v105
    %v118 = vpack.c.bf16 %v108, %v107
    %v119 = vld [vmem:[#allocation3] sm:$0xf]
    %v120 = vld [vmem:[#allocation3 + $0x4] sm:$0xf]
    %v121 = vld [vmem:[#allocation3 + $0x8] sm:$0xf]
    %v122 = vld [vmem:[#allocation3 + $0xc] sm:$0xf]
    %v127 = vunpack.c.l.b16 %v119
    %v128 = vunpack.c.l.b16 %v120
    %v129 = vunpack.c.l.b16 %v121
    %v130 = vunpack.c.l.b16 %v122
    %v131 = vpack.c.b16 %v128, %v127
    %v132 = vpack.c.b16 %v130, %v129
    %vm135 = vcmask 261120
    %v137 = vsel %vm135, %v109, 0
    %v140 = vsel %vm135, %v110, 0
    %v143 = vsel %vm135, %v111, 0
    %v146 = vsel %vm135, %v112, 0
    %v149 = vsel %vm135, %v113, 0
    %v152 = vsel %vm135, %v114, 0
    %v155 = vsel %vm135, %v115, 0
    %v158 = vsel %vm135, %v116, 0
    %v161 = vsel %vm135, %v117, 0
    %v164 = vsel %vm135, %v118, 0
    %166 = vmatpush.bf16.msra.mxu0 0
    %167 = vmatpush.bf16.msra.mxu0 0
    %168 = vmatpush.bf16.msra.mxu0 0
    %169 = vmatpush.bf16.msra.mxu0 0
    %170 = vmatpush.bf16.msra.mxu0 0
    %171 = vmatpush.bf16.msra.mxu0 0
    %172 = vmatpush.bf16.msra.mxu0 %v132
    %173 = vmatpush.bf16.msra.mxu0 %v131
    %174 = vmatmul.bf16.gmra.mxu0 %v137
    %v175 = vpop.f32.mrf.mxu0
    %v176 = vadd.f32 0.0, %v175
    %v177 = vpop.f32.mrf.mxu0
    %v178 = vadd.f32 0.0, %v177
    %179 = vmatmul.bf16.gmra.mxu0 %v140
    %v180 = vpop.f32.mrf.mxu0
    %v181 = vadd.f32 0.0, %v180
    %v182 = vpop.f32.mrf.mxu0
    %v183 = vadd.f32 0.0, %v182
    %184 = vmatmul.bf16.gmra.mxu0 %v143
    %v185 = vpop.f32.mrf.mxu0
    %v186 = vadd.f32 0.0, %v185
    %v187 = vpop.f32.mrf.mxu0
    %v188 = vadd.f32 0.0, %v187
    %189 = vmatmul.bf16.gmra.mxu0 %v146
    %v190 = vpop.f32.mrf.mxu0
    %v191 = vadd.f32 0.0, %v190
    %v192 = vpop.f32.mrf.mxu0
    %v193 = vadd.f32 0.0, %v192
    %194 = vmatmul.bf16.gmra.mxu0 %v149
    %v195 = vpop.f32.mrf.mxu0
    %v196 = vadd.f32 0.0, %v195
    %v197 = vpop.f32.mrf.mxu0
    %v198 = vadd.f32 0.0, %v197
    %199 = vmatmul.bf16.gmra.mxu0 %v152
    %v200 = vpop.f32.mrf.mxu0
    %v201 = vadd.f32 0.0, %v200
    %v202 = vpop.f32.mrf.mxu0
    %v203 = vadd.f32 0.0, %v202
    %204 = vmatmul.bf16.gmra.mxu0 %v155
    %v205 = vpop.f32.mrf.mxu0
    %v206 = vadd.f32 0.0, %v205
    %v207 = vpop.f32.mrf.mxu0
    %v208 = vadd.f32 0.0, %v207
    %209 = vmatmul.bf16.gmra.mxu0 %v158
    %v210 = vpop.f32.mrf.mxu0
    %v211 = vadd.f32 0.0, %v210
    %v212 = vpop.f32.mrf.mxu0
    %v213 = vadd.f32 0.0, %v212
    %214 = vmatmul.bf16.gmra.mxu0 %v161
    %v215 = vpop.f32.mrf.mxu0
    %v216 = vadd.f32 0.0, %v215
    %v217 = vpop.f32.mrf.mxu0
    %v218 = vadd.f32 0.0, %v217
    %219 = vmatmul.bf16.gmra.mxu0 %v164
    %v220 = vpop.f32.mrf.mxu0
    %v221 = vadd.f32 0.0, %v220
    %v222 = vpop.f32.mrf.mxu0
    %v223 = vadd.f32 0.0, %v222
    %224 = vdwg.mxu0
    %v225 = vadd.f32 %v69, %v176
    %v226 = vadd.f32 %v70, %v178
    %v227 = vadd.f32 %v71, %v181
    %v228 = vadd.f32 %v72, %v183
    %v229 = vadd.f32 %v73, %v186
    %v230 = vadd.f32 %v74, %v188
    %v231 = vadd.f32 %v75, %v191
    %v232 = vadd.f32 %v76, %v193
    %v233 = vadd.f32 %v77, %v196
    %v234 = vadd.f32 %v78, %v198
    %v235 = vadd.f32 %v79, %v201
    %v236 = vadd.f32 %v80, %v203
    %v237 = vadd.f32 %v81, %v206
    %v238 = vadd.f32 %v82, %v208
    %v239 = vadd.f32 %v83, %v211
    %v240 = vadd.f32 %v84, %v213
    %v241 = vadd.f32 %v85, %v216
    %v242 = vadd.f32 %v86, %v218
    %v243 = vadd.f32 %v87, %v221
    %v244 = vadd.f32 %v88, %v223
    %245 = vst [vmem:[#allocation2] sm:$0xff] %v225
    %246 = vst [vmem:[#allocation2 + $0x8] sm:$0xff] %v226
    %247 = vst [vmem:[#allocation2 + $0x10] sm:$0xff] %v227
    %248 = vst [vmem:[#allocation2 + $0x18] sm:$0xff] %v228
    %249 = vst [vmem:[#allocation2 + $0x20] sm:$0xff] %v229
    %250 = vst [vmem:[#allocation2 + $0x28] sm:$0xff] %v230
    %251 = vst [vmem:[#allocation2 + $0x30] sm:$0xff] %v231
    %252 = vst [vmem:[#allocation2 + $0x38] sm:$0xff] %v232
    %253 = vst [vmem:[#allocation2 + $0x40] sm:$0xff] %v233
    %254 = vst [vmem:[#allocation2 + $0x48] sm:$0xff] %v234
    %255 = vst [vmem:[#allocation2 + $0x50] sm:$0xff] %v235
    %256 = vst [vmem:[#allocation2 + $0x58] sm:$0xff] %v236
    %257 = vst [vmem:[#allocation2 + $0x60] sm:$0xff] %v237
    %258 = vst [vmem:[#allocation2 + $0x68] sm:$0xff] %v238
    %259 = vst [vmem:[#allocation2 + $0x70] sm:$0xff] %v239
    %260 = vst [vmem:[#allocation2 + $0x78] sm:$0xff] %v240
    %261 = vst [vmem:[#allocation2 + $0x80] sm:$0xff] %v241
    %262 = vst [vmem:[#allocation2 + $0x88] sm:$0xff] %v242
    %263 = vst [vmem:[#allocation2 + $0x90] sm:$0xff] %v243
    %264 = vst [vmem:[#allocation2 + $0x98] sm:$0xff] %v244
    // Predicated region
    $region26: #{encoder_layer_forward.5} parent=1 // pred_check
      %p265 = pneg %p45
    $region27: #{encoder_layer_forward.5} parent=1 // pred_check_branch
      %267 = sbr.rel (%p265) target = $region29
    $region28: #{encoder_layer_forward.5} parent=1 // pred_region
      %v268 = vld [vmem:[#allocation2] sm:$0xff]
      %v269 = vld [vmem:[#allocation2 + $0x8] sm:$0xff]
      %v270 = vld [vmem:[#allocation2 + $0x10] sm:$0xff]
      %v271 = vld [vmem:[#allocation2 + $0x18] sm:$0xff]
      %v272 = vld [vmem:[#allocation2 + $0x20] sm:$0xff]
      %v273 = vld [vmem:[#allocation2 + $0x28] sm:$0xff]
      %v274 = vld [vmem:[#allocation2 + $0x30] sm:$0xff]
      %v275 = vld [vmem:[#allocation2 + $0x38] sm:$0xff]
      %v276 = vld [vmem:[#allocation2 + $0x40] sm:$0xff]
      %v277 = vld [vmem:[#allocation2 + $0x48] sm:$0xff]
      %v278 = vld [vmem:[#allocation2 + $0x50] sm:$0xff]
      %v279 = vld [vmem:[#allocation2 + $0x58] sm:$0xff]
      %v280 = vld [vmem:[#allocation2 + $0x60] sm:$0xff]
      %v281 = vld [vmem:[#allocation2 + $0x68] sm:$0xff]
      %v282 = vld [vmem:[#allocation2 + $0x70] sm:$0xff]
      %v283 = vld [vmem:[#allocation2 + $0x78] sm:$0xff]
      %v284 = vld [vmem:[#allocation2 + $0x80] sm:$0xff]
      %v285 = vld [vmem:[#allocation2 + $0x88] sm:$0xff]
      %v286 = vld [vmem:[#allocation2 + $0x90] sm:$0xff]
      %v287 = vld [vmem:[#allocation2 + $0x98] sm:$0xff]
      %v288 = vld [vmem:[#allocation5] sm:$0x1]
      %v290 = vperm.slane %v288, 0
      %v292 = vadd.f32 %v268, %v290
      %v293 = vadd.f32 %v269, %v290
      %v294 = vadd.f32 %v270, %v290
      %v295 = vadd.f32 %v271, %v290
      %v296 = vadd.f32 %v272, %v290
      %v297 = vadd.f32 %v273, %v290
      %v298 = vadd.f32 %v274, %v290
      %v299 = vadd.f32 %v275, %v290
      %v300 = vadd.f32 %v276, %v290
      %v301 = vadd.f32 %v277, %v290
      %v302 = vadd.f32 %v278, %v290
      %v303 = vadd.f32 %v279, %v290
      %v304 = vadd.f32 %v280, %v290
      %v305 = vadd.f32 %v281, %v290
      %v306 = vadd.f32 %v282, %v290
      %v307 = vadd.f32 %v283, %v290
      %v308 = vadd.f32 %v284, %v290
      %v309 = vadd.f32 %v285, %v290
      %v310 = vadd.f32 %v286, %v290
      %v311 = vadd.f32 %v287, %v290
      %312 = vst [vmem:[%s3] sm:$0xff] %v292
      %313 = vst [vmem:[%s3 + $0x8] sm:$0xff] %v293
      %314 = vst [vmem:[%s3 + $0x10] sm:$0xff] %v294
      %315 = vst [vmem:[%s3 + $0x18] sm:$0xff] %v295
      %316 = vst [vmem:[%s3 + $0x20] sm:$0xff] %v296
      %317 = vst [vmem:[%s3 + $0x28] sm:$0xff] %v297
      %318 = vst [vmem:[%s3 + $0x30] sm:$0xff] %v298
      %319 = vst [vmem:[%s3 + $0x38] sm:$0xff] %v299
      %320 = vst [vmem:[%s3 + $0x40] sm:$0xff] %v300
      %321 = vst [vmem:[%s3 + $0x48] sm:$0xff] %v301
      %322 = vst [vmem:[%s3 + $0x50] sm:$0xff] %v302
      %323 = vst [vmem:[%s3 + $0x58] sm:$0xff] %v303
      %324 = vst [vmem:[%s3 + $0x60] sm:$0xff] %v304
      %325 = vst [vmem:[%s3 + $0x68] sm:$0xff] %v305
      %326 = vst [vmem:[%s3 + $0x70] sm:$0xff] %v306
      %327 = vst [vmem:[%s3 + $0x78] sm:$0xff] %v307
      %328 = vst [vmem:[%s3 + $0x80] sm:$0xff] %v308
      %329 = vst [vmem:[%s3 + $0x88] sm:$0xff] %v309
      %330 = vst [vmem:[%s3 + $0x90] sm:$0xff] %v310
      %331 = vst [vmem:[%s3 + $0x98] sm:$0xff] %v311
    $region29: #{encoder_layer_forward.5} parent=1 // pred_fallthru
      _
    // Predicated region
    $region30: #{encoder_layer_forward.5} parent=1 // pred_check
      _
    $region31: #{encoder_layer_forward.5} parent=1 // pred_check_branch
      %333 = sbr.rel (0) target = $region33
    $region32: #{encoder_layer_forward.5} parent=1 // pred_region
      _
    $region33: #{encoder_layer_forward.5} parent=1 // pred_fallthru
      _
    // Predicated region
    $region34: #{encoder_layer_forward.5} parent=1 // pred_check
      _
    $region35: #{encoder_layer_forward.5} parent=1 // pred_check_branch
      %335 = sbr.rel (0) target = $region37
    $region36: #{encoder_layer_forward.5} parent=1 // pred_region
      _
    $region37: #{encoder_layer_forward.5} parent=1 // pred_fallthru
      _
    %336 = vsyncpa [#allocation4], 1
    %337 = vsyncpa [#allocation6], 1

// kernel: encoder_layer_forward.6
$region0: #{encoder_layer_forward.6}
  #allocation0 [shape = 'u32[]', space=smem, size = 0x4, offset = 0x4, fixed_abs, tag = 'smem constant byte address 0x4 - core index']
  #allocation1 [shape = 'u32[72,128]{1,0:T(1,128)}', space=vmem, size = 0x9000, scoped, tag = 'internal scratch']
  #allocation2 [shape = 'f32[160,128]{1,0:T(8,128)}', space=vmem, size = 0x14000, scoped, tag = 'scratch operand']
  %s0 = inlined_call_operand.vmem [shape: f32[160,32], index: 0, kind: input, shape index: {}]
  %s1 = inlined_call_operand.vmem [shape: bf16[32,128], index: 1, kind: input, shape index: {}]
  %s2 = inlined_call_operand.vmem [shape: f32[1,128], index: 2, kind: input, shape index: {}]
  %s3 = inlined_call_operand.vmem [shape: f32[160,128], index: 3, kind: output, shape index: {}]
  %s4 = sld [smem:[#allocation0]]
  $region30: #{encoder_layer_forward.6} parent=0
    _
  %s6 = ssub.s32 1, %s4
  %s7 = scalar_select 0, %s6, %s4
  // Predicated region
  $region2: #{encoder_layer_forward.6} parent=0 // pred_check
    _
  $region3: #{encoder_layer_forward.6} parent=0 // pred_check_branch
    %9 = sbr.rel (0) target = $region5
  $region4: #{encoder_layer_forward.6} parent=0 // pred_region
    _
  $region5: #{encoder_layer_forward.6} parent=0 // pred_fallthru
    _
  // Predicated region
  $region6: #{encoder_layer_forward.6} parent=0 // pred_check
    _
  $region7: #{encoder_layer_forward.6} parent=0 // pred_check_branch
    %11 = sbr.rel (0) target = $region9
  $region8: #{encoder_layer_forward.6} parent=0 // pred_region
    _
  $region9: #{encoder_layer_forward.6} parent=0 // pred_fallthru
    _
  // Predicated region
  $region10: #{encoder_layer_forward.6} parent=0 // pred_check
    _
  $region11: #{encoder_layer_forward.6} parent=0 // pred_check_branch
    %13 = sbr.rel (0) target = $region13
  $region12: #{encoder_layer_forward.6} parent=0 // pred_region
    _
  $region13: #{encoder_layer_forward.6} parent=0 // pred_fallthru
    _
  %p15 = scmp.eq.s32.totalorder 0, 0
  // Predicated region
  $region14: #{encoder_layer_forward.6} parent=0 // pred_check
    %p16 = pneg %p15
  $region15: #{encoder_layer_forward.6} parent=0 // pred_check_branch
    %18 = sbr.rel (%p16) target = $region17
  $region16: #{encoder_layer_forward.6} parent=0 // pred_region
    %19 = vst [vmem:[#allocation2] sm:$0xff] 0.0
    %20 = vst [vmem:[#allocation2 + $0x8] sm:$0xff] 0.0
    %21 = vst [vmem:[#allocation2 + $0x10] sm:$0xff] 0.0
    %22 = vst [vmem:[#allocation2 + $0x18] sm:$0xff] 0.0
    %23 = vst [vmem:[#allocation2 + $0x20] sm:$0xff] 0.0
    %24 = vst [vmem:[#allocation2 + $0x28] sm:$0xff] 0.0
    %25 = vst [vmem:[#allocation2 + $0x30] sm:$0xff] 0.0
    %26 = vst [vmem:[#allocation2 + $0x38] sm:$0xff] 0.0
    %27 = vst [vmem:[#allocation2 + $0x40] sm:$0xff] 0.0
    %28 = vst [vmem:[#allocation2 + $0x48] sm:$0xff] 0.0
    %29 = vst [vmem:[#allocation2 + $0x50] sm:$0xff] 0.0
    %30 = vst [vmem:[#allocation2 + $0x58] sm:$0xff] 0.0
    %31 = vst [vmem:[#allocation2 + $0x60] sm:$0xff] 0.0
    %32 = vst [vmem:[#allocation2 + $0x68] sm:$0xff] 0.0
    %33 = vst [vmem:[#allocation2 + $0x70] sm:$0xff] 0.0
    %34 = vst [vmem:[#allocation2 + $0x78] sm:$0xff] 0.0
    %35 = vst [vmem:[#allocation2 + $0x80] sm:$0xff] 0.0
    %36 = vst [vmem:[#allocation2 + $0x88] sm:$0xff] 0.0
    %37 = vst [vmem:[#allocation2 + $0x90] sm:$0xff] 0.0
    %38 = vst [vmem:[#allocation2 + $0x98] sm:$0xff] 0.0
  $region17: #{encoder_layer_forward.6} parent=0 // pred_fallthru
    _
  %v39 = vld [vmem:[#allocation2] sm:$0xff]
  %v40 = vld [vmem:[#allocation2 + $0x8] sm:$0xff]
  %v41 = vld [vmem:[#allocation2 + $0x10] sm:$0xff]
  %v42 = vld [vmem:[#allocation2 + $0x18] sm:$0xff]
  %v43 = vld [vmem:[#allocation2 + $0x20] sm:$0xff]
  %v44 = vld [vmem:[#allocation2 + $0x28] sm:$0xff]
  %v45 = vld [vmem:[#allocation2 + $0x30] sm:$0xff]
  %v46 = vld [vmem:[#allocation2 + $0x38] sm:$0xff]
  %v47 = vld [vmem:[#allocation2 + $0x40] sm:$0xff]
  %v48 = vld [vmem:[#allocation2 + $0x48] sm:$0xff]
  %v49 = vld [vmem:[#allocation2 + $0x50] sm:$0xff]
  %v50 = vld [vmem:[#allocation2 + $0x58] sm:$0xff]
  %v51 = vld [vmem:[#allocation2 + $0x60] sm:$0xff]
  %v52 = vld [vmem:[#allocation2 + $0x68] sm:$0xff]
  %v53 = vld [vmem:[#allocation2 + $0x70] sm:$0xff]
  %v54 = vld [vmem:[#allocation2 + $0x78] sm:$0xff]
  %v55 = vld [vmem:[#allocation2 + $0x80] sm:$0xff]
  %v56 = vld [vmem:[#allocation2 + $0x88] sm:$0xff]
  %v57 = vld [vmem:[#allocation2 + $0x90] sm:$0xff]
  %v58 = vld [vmem:[#allocation2 + $0x98] sm:$0xff]
  %v59 = vld [vmem:[%s0] sm:$0xff]
  %v60 = vld [vmem:[%s0 + $0x8] sm:$0xff]
  %v61 = vld [vmem:[%s0 + $0x10] sm:$0xff]
  %v62 = vld [vmem:[%s0 + $0x18] sm:$0xff]
  %v63 = vld [vmem:[%s0 + $0x20] sm:$0xff]
  %v64 = vld [vmem:[%s0 + $0x28] sm:$0xff]
  %v65 = vld [vmem:[%s0 + $0x30] sm:$0xff]
  %v66 = vld [vmem:[%s0 + $0x38] sm:$0xff]
  %v67 = vld [vmem:[%s0 + $0x40] sm:$0xff]
  %v68 = vld [vmem:[%s0 + $0x48] sm:$0xff]
  %v69 = vld [vmem:[%s0 + $0x50] sm:$0xff]
  %v70 = vld [vmem:[%s0 + $0x58] sm:$0xff]
  %v71 = vld [vmem:[%s0 + $0x60] sm:$0xff]
  %v72 = vld [vmem:[%s0 + $0x68] sm:$0xff]
  %v73 = vld [vmem:[%s0 + $0x70] sm:$0xff]
  %v74 = vld [vmem:[%s0 + $0x78] sm:$0xff]
  %v75 = vld [vmem:[%s0 + $0x80] sm:$0xff]
  %v76 = vld [vmem:[%s0 + $0x88] sm:$0xff]
  %v77 = vld [vmem:[%s0 + $0x90] sm:$0xff]
  %v78 = vld [vmem:[%s0 + $0x98] sm:$0xff]
  %v79 = vpack.c.bf16 %v60, %v59
  %v80 = vpack.c.bf16 %v62, %v61
  %v81 = vpack.c.bf16 %v64, %v63
  %v82 = vpack.c.bf16 %v66, %v65
  %v83 = vpack.c.bf16 %v68, %v67
  %v84 = vpack.c.bf16 %v70, %v69
  %v85 = vpack.c.bf16 %v72, %v71
  %v86 = vpack.c.bf16 %v74, %v73
  %v87 = vpack.c.bf16 %v76, %v75
  %v88 = vpack.c.bf16 %v78, %v77
  %v89 = vld [vmem:[%s1] sm:$0xf]
  %v90 = vld [vmem:[%s1 + $0x4] sm:$0xf]
  %v91 = vld [vmem:[%s1 + $0x8] sm:$0xf]
  %v92 = vld [vmem:[%s1 + $0xc] sm:$0xf]
  %v97 = vunpack.c.l.b16 %v89
  %v98 = vunpack.c.l.b16 %v90
  %v99 = vunpack.c.l.b16 %v91
  %v100 = vunpack.c.l.b16 %v92
  %v101 = vpack.c.b16 %v98, %v97
  %v102 = vpack.c.b16 %v100, %v99
  %vm105 = vcmask 261120
  %v107 = vsel %vm105, %v79, 0
  %v110 = vsel %vm105, %v80, 0
  %v113 = vsel %vm105, %v81, 0
  %v116 = vsel %vm105, %v82, 0
  %v119 = vsel %vm105, %v83, 0
  %v122 = vsel %vm105, %v84, 0
  %v125 = vsel %vm105, %v85, 0
  %v128 = vsel %vm105, %v86, 0
  %v131 = vsel %vm105, %v87, 0
  %v134 = vsel %vm105, %v88, 0
  %136 = vmatpush.bf16.msra.mxu0 0
  %137 = vmatpush.bf16.msra.mxu0 0
  %138 = vmatpush.bf16.msra.mxu0 0
  %139 = vmatpush.bf16.msra.mxu0 0
  %140 = vmatpush.bf16.msra.mxu0 0
  %141 = vmatpush.bf16.msra.mxu0 0
  %142 = vmatpush.bf16.msra.mxu0 %v102
  %143 = vmatpush.bf16.msra.mxu0 %v101
  %144 = vmatmul.bf16.gmra.mxu0 %v107
  %v145 = vpop.f32.mrf.mxu0
  %v146 = vadd.f32 0.0, %v145
  %v147 = vpop.f32.mrf.mxu0
  %v148 = vadd.f32 0.0, %v147
  %149 = vmatmul.bf16.gmra.mxu0 %v110
  %v150 = vpop.f32.mrf.mxu0
  %v151 = vadd.f32 0.0, %v150
  %v152 = vpop.f32.mrf.mxu0
  %v153 = vadd.f32 0.0, %v152
  %154 = vmatmul.bf16.gmra.mxu0 %v113
  %v155 = vpop.f32.mrf.mxu0
  %v156 = vadd.f32 0.0, %v155
  %v157 = vpop.f32.mrf.mxu0
  %v158 = vadd.f32 0.0, %v157
  %159 = vmatmul.bf16.gmra.mxu0 %v116
  %v160 = vpop.f32.mrf.mxu0
  %v161 = vadd.f32 0.0, %v160
  %v162 = vpop.f32.mrf.mxu0
  %v163 = vadd.f32 0.0, %v162
  %164 = vmatmul.bf16.gmra.mxu0 %v119
  %v165 = vpop.f32.mrf.mxu0
  %v166 = vadd.f32 0.0, %v165
  %v167 = vpop.f32.mrf.mxu0
  %v168 = vadd.f32 0.0, %v167
  %169 = vmatmul.bf16.gmra.mxu0 %v122
  %v170 = vpop.f32.mrf.mxu0
  %v171 = vadd.f32 0.0, %v170
  %v172 = vpop.f32.mrf.mxu0
  %v173 = vadd.f32 0.0, %v172
  %174 = vmatmul.bf16.gmra.mxu0 %v125
  %v175 = vpop.f32.mrf.mxu0
  %v176 = vadd.f32 0.0, %v175
  %v177 = vpop.f32.mrf.mxu0
  %v178 = vadd.f32 0.0, %v177
  %179 = vmatmul.bf16.gmra.mxu0 %v128
  %v180 = vpop.f32.mrf.mxu0
  %v181 = vadd.f32 0.0, %v180
  %v182 = vpop.f32.mrf.mxu0
  %v183 = vadd.f32 0.0, %v182
  %184 = vmatmul.bf16.gmra.mxu0 %v131
  %v185 = vpop.f32.mrf.mxu0
  %v186 = vadd.f32 0.0, %v185
  %v187 = vpop.f32.mrf.mxu0
  %v188 = vadd.f32 0.0, %v187
  %189 = vmatmul.bf16.gmra.mxu0 %v134
  %v190 = vpop.f32.mrf.mxu0
  %v191 = vadd.f32 0.0, %v190
  %v192 = vpop.f32.mrf.mxu0
  %v193 = vadd.f32 0.0, %v192
  %194 = vdwg.mxu0
  %v195 = vadd.f32 %v39, %v146
  %v196 = vadd.f32 %v40, %v148
  %v197 = vadd.f32 %v41, %v151
  %v198 = vadd.f32 %v42, %v153
  %v199 = vadd.f32 %v43, %v156
  %v200 = vadd.f32 %v44, %v158
  %v201 = vadd.f32 %v45, %v161
  %v202 = vadd.f32 %v46, %v163
  %v203 = vadd.f32 %v47, %v166
  %v204 = vadd.f32 %v48, %v168
  %v205 = vadd.f32 %v49, %v171
  %v206 = vadd.f32 %v50, %v173
  %v207 = vadd.f32 %v51, %v176
  %v208 = vadd.f32 %v52, %v178
  %v209 = vadd.f32 %v53, %v181
  %v210 = vadd.f32 %v54, %v183
  %v211 = vadd.f32 %v55, %v186
  %v212 = vadd.f32 %v56, %v188
  %v213 = vadd.f32 %v57, %v191
  %v214 = vadd.f32 %v58, %v193
  %215 = vst [vmem:[#allocation2] sm:$0xff] %v195
  %216 = vst [vmem:[#allocation2 + $0x8] sm:$0xff] %v196
  %217 = vst [vmem:[#allocation2 + $0x10] sm:$0xff] %v197
  %218 = vst [vmem:[#allocation2 + $0x18] sm:$0xff] %v198
  %219 = vst [vmem:[#allocation2 + $0x20] sm:$0xff] %v199
  %220 = vst [vmem:[#allocation2 + $0x28] sm:$0xff] %v200
  %221 = vst [vmem:[#allocation2 + $0x30] sm:$0xff] %v201
  %222 = vst [vmem:[#allocation2 + $0x38] sm:$0xff] %v202
  %223 = vst [vmem:[#allocation2 + $0x40] sm:$0xff] %v203
  %224 = vst [vmem:[#allocation2 + $0x48] sm:$0xff] %v204
  %225 = vst [vmem:[#allocation2 + $0x50] sm:$0xff] %v205
  %226 = vst [vmem:[#allocation2 + $0x58] sm:$0xff] %v206
  %227 = vst [vmem:[#allocation2 + $0x60] sm:$0xff] %v207
  %228 = vst [vmem:[#allocation2 + $0x68] sm:$0xff] %v208
  %229 = vst [vmem:[#allocation2 + $0x70] sm:$0xff] %v209
  %230 = vst [vmem:[#allocation2 + $0x78] sm:$0xff] %v210
  %231 = vst [vmem:[#allocation2 + $0x80] sm:$0xff] %v211
  %232 = vst [vmem:[#allocation2 + $0x88] sm:$0xff] %v212
  %233 = vst [vmem:[#allocation2 + $0x90] sm:$0xff] %v213
  %234 = vst [vmem:[#allocation2 + $0x98] sm:$0xff] %v214
  // Predicated region
  $region18: #{encoder_layer_forward.6} parent=0 // pred_check
    %p235 = pneg %p15
  $region19: #{encoder_layer_forward.6} parent=0 // pred_check_branch
    %237 = sbr.rel (%p235) target = $region21
  $region20: #{encoder_layer_forward.6} parent=0 // pred_region
    %v238 = vld [vmem:[#allocation2] sm:$0xff]
    %v239 = vld [vmem:[#allocation2 + $0x8] sm:$0xff]
    %v240 = vld [vmem:[#allocation2 + $0x10] sm:$0xff]
    %v241 = vld [vmem:[#allocation2 + $0x18] sm:$0xff]
    %v242 = vld [vmem:[#allocation2 + $0x20] sm:$0xff]
    %v243 = vld [vmem:[#allocation2 + $0x28] sm:$0xff]
    %v244 = vld [vmem:[#allocation2 + $0x30] sm:$0xff]
    %v245 = vld [vmem:[#allocation2 + $0x38] sm:$0xff]
    %v246 = vld [vmem:[#allocation2 + $0x40] sm:$0xff]
    %v247 = vld [vmem:[#allocation2 + $0x48] sm:$0xff]
    %v248 = vld [vmem:[#allocation2 + $0x50] sm:$0xff]
    %v249 = vld [vmem:[#allocation2 + $0x58] sm:$0xff]
    %v250 = vld [vmem:[#allocation2 + $0x60] sm:$0xff]
    %v251 = vld [vmem:[#allocation2 + $0x68] sm:$0xff]
    %v252 = vld [vmem:[#allocation2 + $0x70] sm:$0xff]
    %v253 = vld [vmem:[#allocation2 + $0x78] sm:$0xff]
    %v254 = vld [vmem:[#allocation2 + $0x80] sm:$0xff]
    %v255 = vld [vmem:[#allocation2 + $0x88] sm:$0xff]
    %v256 = vld [vmem:[#allocation2 + $0x90] sm:$0xff]
    %v257 = vld [vmem:[#allocation2 + $0x98] sm:$0xff]
    %v258 = vld [vmem:[%s2] sm:$0x1]
    %v260 = vperm.slane %v258, 0
    %v262 = vadd.f32 %v238, %v260
    %v263 = vadd.f32 %v239, %v260
    %v264 = vadd.f32 %v240, %v260
    %v265 = vadd.f32 %v241, %v260
    %v266 = vadd.f32 %v242, %v260
    %v267 = vadd.f32 %v243, %v260
    %v268 = vadd.f32 %v244, %v260
    %v269 = vadd.f32 %v245, %v260
    %v270 = vadd.f32 %v246, %v260
    %v271 = vadd.f32 %v247, %v260
    %v272 = vadd.f32 %v248, %v260
    %v273 = vadd.f32 %v249, %v260
    %v274 = vadd.f32 %v250, %v260
    %v275 = vadd.f32 %v251, %v260
    %v276 = vadd.f32 %v252, %v260
    %v277 = vadd.f32 %v253, %v260
    %v278 = vadd.f32 %v254, %v260
    %v279 = vadd.f32 %v255, %v260
    %v280 = vadd.f32 %v256, %v260
    %v281 = vadd.f32 %v257, %v260
    %282 = vst [vmem:[%s3] sm:$0xff] %v262
    %283 = vst [vmem:[%s3 + $0x8] sm:$0xff] %v263
    %284 = vst [vmem:[%s3 + $0x10] sm:$0xff] %v264
    %285 = vst [vmem:[%s3 + $0x18] sm:$0xff] %v265
    %286 = vst [vmem:[%s3 + $0x20] sm:$0xff] %v266
    %287 = vst [vmem:[%s3 + $0x28] sm:$0xff] %v267
    %288 = vst [vmem:[%s3 + $0x30] sm:$0xff] %v268
    %289 = vst [vmem:[%s3 + $0x38] sm:$0xff] %v269
    %290 = vst [vmem:[%s3 + $0x40] sm:$0xff] %v270
    %291 = vst [vmem:[%s3 + $0x48] sm:$0xff] %v271
    %292 = vst [vmem:[%s3 + $0x50] sm:$0xff] %v272
    %293 = vst [vmem:[%s3 + $0x58] sm:$0xff] %v273
    %294 = vst [vmem:[%s3 + $0x60] sm:$0xff] %v274
    %295 = vst [vmem:[%s3 + $0x68] sm:$0xff] %v275
    %296 = vst [vmem:[%s3 + $0x70] sm:$0xff] %v276
    %297 = vst [vmem:[%s3 + $0x78] sm:$0xff] %v277
    %298 = vst [vmem:[%s3 + $0x80] sm:$0xff] %v278
    %299 = vst [vmem:[%s3 + $0x88] sm:$0xff] %v279
    %300 = vst [vmem:[%s3 + $0x90] sm:$0xff] %v280
    %301 = vst [vmem:[%s3 + $0x98] sm:$0xff] %v281
  $region21: #{encoder_layer_forward.6} parent=0 // pred_fallthru
    _
  // Predicated region
  $region22: #{encoder_layer_forward.6} parent=0 // pred_check
    _
  $region23: #{encoder_layer_forward.6} parent=0 // pred_check_branch
    %303 = sbr.rel (0) target = $region25
  $region24: #{encoder_layer_forward.6} parent=0 // pred_region
    _
  $region25: #{encoder_layer_forward.6} parent=0 // pred_fallthru
    _
  // Predicated region
  $region26: #{encoder_layer_forward.6} parent=0 // pred_check
    _
  $region27: #{encoder_layer_forward.6} parent=0 // pred_check_branch
    %305 = sbr.rel (0) target = $region29
  $region28: #{encoder_layer_forward.6} parent=0 // pred_region
    _
  $region29: #{encoder_layer_forward.6} parent=0 // pred_fallthru
    _

// kernel: encoder_layer_forward.7
$region0: #{encoder_layer_forward.7}
  #allocation0 [shape = 'u32[]', space=smem, size = 0x4, offset = 0x4, fixed_abs, tag = 'smem constant byte address 0x4 - core index']
  #allocation1 [shape = 'u32[72,128]{1,0:T(1,128)}', space=vmem, size = 0x9000, scoped, tag = 'internal scratch']
  %s0 = inlined_call_operand.vmem [shape: f32[160,32], index: 0, kind: input, shape index: {}]
  %s1 = inlined_call_operand.vmem [shape: f32[160,32], index: 1, kind: input, shape index: {}]
  %s2 = inlined_call_operand.vmem [shape: f32[1,32], index: 2, kind: input, shape index: {}, may-alias: {2,8}]
  %s3 = inlined_call_operand.vmem [shape: f32[1,32], index: 3, kind: input, shape index: {}, may-alias: {3,7,9}]
  %s4 = inlined_call_operand.vmem [shape: bf16[32,64], index: 4, kind: input, shape index: {}]
  %s5 = inlined_call_operand.vmem [shape: f32[1,64], index: 5, kind: input, shape index: {}]
  %s6 = inlined_call_operand.vmem [shape: bf16[64,32], index: 6, kind: input, shape index: {}]
  %s7 = inlined_call_operand.vmem [shape: f32[1,32], index: 7, kind: input, shape index: {}, may-alias: {3,7,9}]
  %s8 = inlined_call_operand.vmem [shape: f32[1,32], index: 8, kind: input, shape index: {}, may-alias: {2,8}]
  %s9 = inlined_call_operand.vmem [shape: f32[1,32], index: 9, kind: input, shape index: {}, may-alias: {3,7,9}]
  %s10 = inlined_call_operand.vmem [shape: f32[160,32], index: 10, kind: output, shape index: {}]
  %s11 = sld [smem:[#allocation0]]
  $region50: #{encoder_layer_forward.7} parent=0
    _
  %s13 = ssub.s32 1, %s11
  %s14 = scalar_select 0, %s13, %s11
  // Predicated region
  $region2: #{encoder_layer_forward.7} parent=0 // pred_check
    _
  $region3: #{encoder_layer_forward.7} parent=0 // pred_check_branch
    %16 = sbr.rel (0) target = $region5
  $region4: #{encoder_layer_forward.7} parent=0 // pred_region
    _
  $region5: #{encoder_layer_forward.7} parent=0 // pred_fallthru
    _
  // Predicated region
  $region6: #{encoder_layer_forward.7} parent=0 // pred_check
    _
  $region7: #{encoder_layer_forward.7} parent=0 // pred_check_branch
    %18 = sbr.rel (0) target = $region9
  $region8: #{encoder_layer_forward.7} parent=0 // pred_region
    _
  $region9: #{encoder_layer_forward.7} parent=0 // pred_fallthru
    _
  // Predicated region
  $region10: #{encoder_layer_forward.7} parent=0 // pred_check
    _
  $region11: #{encoder_layer_forward.7} parent=0 // pred_check_branch
    %20 = sbr.rel (0) target = $region13
  $region12: #{encoder_layer_forward.7} parent=0 // pred_region
    _
  $region13: #{encoder_layer_forward.7} parent=0 // pred_fallthru
    _
  // Predicated region
  $region14: #{encoder_layer_forward.7} parent=0 // pred_check
    _
  $region15: #{encoder_layer_forward.7} parent=0 // pred_check_branch
    %22 = sbr.rel (0) target = $region17
  $region16: #{encoder_layer_forward.7} parent=0 // pred_region
    _
  $region17: #{encoder_layer_forward.7} parent=0 // pred_fallthru
    _
  // Predicated region
  $region18: #{encoder_layer_forward.7} parent=0 // pred_check
    _
  $region19: #{encoder_layer_forward.7} parent=0 // pred_check_branch
    %24 = sbr.rel (0) target = $region21
  $region20: #{encoder_layer_forward.7} parent=0 // pred_region
    _
  $region21: #{encoder_layer_forward.7} parent=0 // pred_fallthru
    _
  // Predicated region
  $region22: #{encoder_layer_forward.7} parent=0 // pred_check
    _
  $region23: #{encoder_layer_forward.7} parent=0 // pred_check_branch
    %26 = sbr.rel (0) target = $region25
  $region24: #{encoder_layer_forward.7} parent=0 // pred_region
    _
  $region25: #{encoder_layer_forward.7} parent=0 // pred_fallthru
    _
  // Predicated region
  $region26: #{encoder_layer_forward.7} parent=0 // pred_check
    _
  $region27: #{encoder_layer_forward.7} parent=0 // pred_check_branch
    %28 = sbr.rel (0) target = $region29
  $region28: #{encoder_layer_forward.7} parent=0 // pred_region
    _
  $region29: #{encoder_layer_forward.7} parent=0 // pred_fallthru
    _
  // Predicated region
  $region30: #{encoder_layer_forward.7} parent=0 // pred_check
    _
  $region31: #{encoder_layer_forward.7} parent=0 // pred_check_branch
    %30 = sbr.rel (0) target = $region33
  $region32: #{encoder_layer_forward.7} parent=0 // pred_region
    _
  $region33: #{encoder_layer_forward.7} parent=0 // pred_fallthru
    _
  // Predicated region
  $region34: #{encoder_layer_forward.7} parent=0 // pred_check
    _
  $region35: #{encoder_layer_forward.7} parent=0 // pred_check_branch
    %32 = sbr.rel (0) target = $region37
  $region36: #{encoder_layer_forward.7} parent=0 // pred_region
    _
  $region37: #{encoder_layer_forward.7} parent=0 // pred_fallthru
    _
  // Predicated region
  $region38: #{encoder_layer_forward.7} parent=0 // pred_check
    _
  $region39: #{encoder_layer_forward.7} parent=0 // pred_check_branch
    %34 = sbr.rel (0) target = $region41
  $region40: #{encoder_layer_forward.7} parent=0 // pred_region
    _
  $region41: #{encoder_layer_forward.7} parent=0 // pred_fallthru
    _
  %v36 = vld [vmem:[%s0] sm:$0xff]
  %v37 = vld [vmem:[%s0 + $0x8] sm:$0xff]
  %v38 = vld [vmem:[%s0 + $0x10] sm:$0xff]
  %v39 = vld [vmem:[%s0 + $0x18] sm:$0xff]
  %v40 = vld [vmem:[%s0 + $0x20] sm:$0xff]
  %v41 = vld [vmem:[%s0 + $0x28] sm:$0xff]
  %v42 = vld [vmem:[%s0 + $0x30] sm:$0xff]
  %v43 = vld [vmem:[%s0 + $0x38] sm:$0xff]
  %v44 = vld [vmem:[%s0 + $0x40] sm:$0xff]
  %v45 = vld [vmem:[%s0 + $0x48] sm:$0xff]
  %v46 = vld [vmem:[%s0 + $0x50] sm:$0xff]
  %v47 = vld [vmem:[%s0 + $0x58] sm:$0xff]
  %v48 = vld [vmem:[%s0 + $0x60] sm:$0xff]
  %v49 = vld [vmem:[%s0 + $0x68] sm:$0xff]
  %v50 = vld [vmem:[%s0 + $0x70] sm:$0xff]
  %v51 = vld [vmem:[%s0 + $0x78] sm:$0xff]
  %v52 = vld [vmem:[%s0 + $0x80] sm:$0xff]
  %v53 = vld [vmem:[%s0 + $0x88] sm:$0xff]
  %v54 = vld [vmem:[%s0 + $0x90] sm:$0xff]
  %v55 = vld [vmem:[%s0 + $0x98] sm:$0xff]
  %v56 = vld [vmem:[%s1] sm:$0xff]
  %v57 = vld [vmem:[%s1 + $0x8] sm:$0xff]
  %v58 = vld [vmem:[%s1 + $0x10] sm:$0xff]
  %v59 = vld [vmem:[%s1 + $0x18] sm:$0xff]
  %v60 = vld [vmem:[%s1 + $0x20] sm:$0xff]
  %v61 = vld [vmem:[%s1 + $0x28] sm:$0xff]
  %v62 = vld [vmem:[%s1 + $0x30] sm:$0xff]
  %v63 = vld [vmem:[%s1 + $0x38] sm:$0xff]
  %v64 = vld [vmem:[%s1 + $0x40] sm:$0xff]
  %v65 = vld [vmem:[%s1 + $0x48] sm:$0xff]
  %v66 = vld [vmem:[%s1 + $0x50] sm:$0xff]
  %v67 = vld [vmem:[%s1 + $0x58] sm:$0xff]
  %v68 = vld [vmem:[%s1 + $0x60] sm:$0xff]
  %v69 = vld [vmem:[%s1 + $0x68] sm:$0xff]
  %v70 = vld [vmem:[%s1 + $0x70] sm:$0xff]
  %v71 = vld [vmem:[%s1 + $0x78] sm:$0xff]
  %v72 = vld [vmem:[%s1 + $0x80] sm:$0xff]
  %v73 = vld [vmem:[%s1 + $0x88] sm:$0xff]
  %v74 = vld [vmem:[%s1 + $0x90] sm:$0xff]
  %v75 = vld [vmem:[%s1 + $0x98] sm:$0xff]
  %v76 = vadd.f32 %v36, %v56
  %v77 = vadd.f32 %v37, %v57
  %v78 = vadd.f32 %v38, %v58
  %v79 = vadd.f32 %v39, %v59
  %v80 = vadd.f32 %v40, %v60
  %v81 = vadd.f32 %v41, %v61
  %v82 = vadd.f32 %v42, %v62
  %v83 = vadd.f32 %v43, %v63
  %v84 = vadd.f32 %v44, %v64
  %v85 = vadd.f32 %v45, %v65
  %v86 = vadd.f32 %v46, %v66
  %v87 = vadd.f32 %v47, %v67
  %v88 = vadd.f32 %v48, %v68
  %v89 = vadd.f32 %v49, %v69
  %v90 = vadd.f32 %v50, %v70
  %v91 = vadd.f32 %v51, %v71
  %v92 = vadd.f32 %v52, %v72
  %v93 = vadd.f32 %v53, %v73
  %v94 = vadd.f32 %v54, %v74
  %v95 = vadd.f32 %v55, %v75
  %vm96 = vcmask 261120
  %v97 = vsel %vm96, %v76, 0.0
  %98 = vadd.xlane.f32.xlu0 %v97
  %v99 = vpop.xlane.xlu0 %98
  %v100 = vsel %vm96, %v77, 0.0
  %101 = vadd.xlane.f32.xlu0 %v100
  %v102 = vpop.xlane.xlu0 %101
  %v103 = vsel %vm96, %v78, 0.0
  %104 = vadd.xlane.f32.xlu0 %v103
  %v105 = vpop.xlane.xlu0 %104
  %v106 = vsel %vm96, %v79, 0.0
  %107 = vadd.xlane.f32.xlu0 %v106
  %v108 = vpop.xlane.xlu0 %107
  %v109 = vsel %vm96, %v80, 0.0
  %110 = vadd.xlane.f32.xlu0 %v109
  %v111 = vpop.xlane.xlu0 %110
  %v112 = vsel %vm96, %v81, 0.0
  %113 = vadd.xlane.f32.xlu0 %v112
  %v114 = vpop.xlane.xlu0 %113
  %v115 = vsel %vm96, %v82, 0.0
  %116 = vadd.xlane.f32.xlu0 %v115
  %v117 = vpop.xlane.xlu0 %116
  %v118 = vsel %vm96, %v83, 0.0
  %119 = vadd.xlane.f32.xlu0 %v118
  %v120 = vpop.xlane.xlu0 %119
  %v121 = vsel %vm96, %v84, 0.0
  %122 = vadd.xlane.f32.xlu0 %v121
  %v123 = vpop.xlane.xlu0 %122
  %v124 = vsel %vm96, %v85, 0.0
  %125 = vadd.xlane.f32.xlu0 %v124
  %v126 = vpop.xlane.xlu0 %125
  %v127 = vsel %vm96, %v86, 0.0
  %128 = vadd.xlane.f32.xlu0 %v127
  %v129 = vpop.xlane.xlu0 %128
  %v130 = vsel %vm96, %v87, 0.0
  %131 = vadd.xlane.f32.xlu0 %v130
  %v132 = vpop.xlane.xlu0 %131
  %v133 = vsel %vm96, %v88, 0.0
  %134 = vadd.xlane.f32.xlu0 %v133
  %v135 = vpop.xlane.xlu0 %134
  %v136 = vsel %vm96, %v89, 0.0
  %137 = vadd.xlane.f32.xlu0 %v136
  %v138 = vpop.xlane.xlu0 %137
  %v139 = vsel %vm96, %v90, 0.0
  %140 = vadd.xlane.f32.xlu0 %v139
  %v141 = vpop.xlane.xlu0 %140
  %v142 = vsel %vm96, %v91, 0.0
  %143 = vadd.xlane.f32.xlu0 %v142
  %v144 = vpop.xlane.xlu0 %143
  %v145 = vsel %vm96, %v92, 0.0
  %146 = vadd.xlane.f32.xlu0 %v145
  %v147 = vpop.xlane.xlu0 %146
  %v148 = vsel %vm96, %v93, 0.0
  %149 = vadd.xlane.f32.xlu0 %v148
  %v150 = vpop.xlane.xlu0 %149
  %v151 = vsel %vm96, %v94, 0.0
  %152 = vadd.xlane.f32.xlu0 %v151
  %v153 = vpop.xlane.xlu0 %152
  %v154 = vsel %vm96, %v95, 0.0
  %155 = vadd.xlane.f32.xlu0 %v154
  %v156 = vpop.xlane.xlu0 %155
  %v157 = vrcp.pop 32.0
  %v158 = vmul.f32 32.0, %v157
  %v159 = vsub.f32 1.0, %v158
  %v160 = vmul.f32 %v157, %v159
  %v161 = vadd.f32 %v157, %v160
  %vm162 = vweird.f32 %v157
  %v163 = vsel %vm162, %v157, %v161
  %v164 = vmul.f32 %v99, %v163
  %v165 = vmul.f32 %v102, %v163
  %v166 = vmul.f32 %v105, %v163
  %v167 = vmul.f32 %v108, %v163
  %v168 = vmul.f32 %v111, %v163
  %v169 = vmul.f32 %v114, %v163
  %v170 = vmul.f32 %v117, %v163
  %v171 = vmul.f32 %v120, %v163
  %v172 = vmul.f32 %v123, %v163
  %v173 = vmul.f32 %v126, %v163
  %v174 = vmul.f32 %v129, %v163
  %v175 = vmul.f32 %v132, %v163
  %v176 = vmul.f32 %v135, %v163
  %v177 = vmul.f32 %v138, %v163
  %v178 = vmul.f32 %v141, %v163
  %v179 = vmul.f32 %v144, %v163
  %v180 = vmul.f32 %v147, %v163
  %v181 = vmul.f32 %v150, %v163
  %v182 = vmul.f32 %v153, %v163
  %v183 = vmul.f32 %v156, %v163
  %v184 = vsub.f32 %v76, %v164
  %v185 = vsub.f32 %v77, %v165
  %v186 = vsub.f32 %v78, %v166
  %v187 = vsub.f32 %v79, %v167
  %v188 = vsub.f32 %v80, %v168
  %v189 = vsub.f32 %v81, %v169
  %v190 = vsub.f32 %v82, %v170
  %v191 = vsub.f32 %v83, %v171
  %v192 = vsub.f32 %v84, %v172
  %v193 = vsub.f32 %v85, %v173
  %v194 = vsub.f32 %v86, %v174
  %v195 = vsub.f32 %v87, %v175
  %v196 = vsub.f32 %v88, %v176
  %v197 = vsub.f32 %v89, %v177
  %v198 = vsub.f32 %v90, %v178
  %v199 = vsub.f32 %v91, %v179
  %v200 = vsub.f32 %v92, %v180
  %v201 = vsub.f32 %v93, %v181
  %v202 = vsub.f32 %v94, %v182
  %v203 = vsub.f32 %v95, %v183
  %v204 = vmul.f32 %v184, %v184
  %v205 = vmul.f32 %v185, %v185
  %v206 = vmul.f32 %v186, %v186
  %v207 = vmul.f32 %v187, %v187
  %v208 = vmul.f32 %v188, %v188
  %v209 = vmul.f32 %v189, %v189
  %v210 = vmul.f32 %v190, %v190
  %v211 = vmul.f32 %v191, %v191
  %v212 = vmul.f32 %v192, %v192
  %v213 = vmul.f32 %v193, %v193
  %v214 = vmul.f32 %v194, %v194
  %v215 = vmul.f32 %v195, %v195
  %v216 = vmul.f32 %v196, %v196
  %v217 = vmul.f32 %v197, %v197
  %v218 = vmul.f32 %v198, %v198
  %v219 = vmul.f32 %v199, %v199
  %v220 = vmul.f32 %v200, %v200
  %v221 = vmul.f32 %v201, %v201
  %v222 = vmul.f32 %v202, %v202
  %v223 = vmul.f32 %v203, %v203
  %v224 = vsel %vm96, %v204, 0.0
  %225 = vadd.xlane.f32.xlu0 %v224
  %v226 = vpop.xlane.xlu0 %225
  %v227 = vsel %vm96, %v205, 0.0
  %228 = vadd.xlane.f32.xlu0 %v227
  %v229 = vpop.xlane.xlu0 %228
  %v230 = vsel %vm96, %v206, 0.0
  %231 = vadd.xlane.f32.xlu0 %v230
  %v232 = vpop.xlane.xlu0 %231
  %v233 = vsel %vm96, %v207, 0.0
  %234 = vadd.xlane.f32.xlu0 %v233
  %v235 = vpop.xlane.xlu0 %234
  %v236 = vsel %vm96, %v208, 0.0
  %237 = vadd.xlane.f32.xlu0 %v236
  %v238 = vpop.xlane.xlu0 %237
  %v239 = vsel %vm96, %v209, 0.0
  %240 = vadd.xlane.f32.xlu0 %v239
  %v241 = vpop.xlane.xlu0 %240
  %v242 = vsel %vm96, %v210, 0.0
  %243 = vadd.xlane.f32.xlu0 %v242
  %v244 = vpop.xlane.xlu0 %243
  %v245 = vsel %vm96, %v211, 0.0
  %246 = vadd.xlane.f32.xlu0 %v245
  %v247 = vpop.xlane.xlu0 %246
  %v248 = vsel %vm96, %v212, 0.0
  %249 = vadd.xlane.f32.xlu0 %v248
  %v250 = vpop.xlane.xlu0 %249
  %v251 = vsel %vm96, %v213, 0.0
  %252 = vadd.xlane.f32.xlu0 %v251
  %v253 = vpop.xlane.xlu0 %252
  %v254 = vsel %vm96, %v214, 0.0
  %255 = vadd.xlane.f32.xlu0 %v254
  %v256 = vpop.xlane.xlu0 %255
  %v257 = vsel %vm96, %v215, 0.0
  %258 = vadd.xlane.f32.xlu0 %v257
  %v259 = vpop.xlane.xlu0 %258
  %v260 = vsel %vm96, %v216, 0.0
  %261 = vadd.xlane.f32.xlu0 %v260
  %v262 = vpop.xlane.xlu0 %261
  %v263 = vsel %vm96, %v217, 0.0
  %264 = vadd.xlane.f32.xlu0 %v263
  %v265 = vpop.xlane.xlu0 %264
  %v266 = vsel %vm96, %v218, 0.0
  %267 = vadd.xlane.f32.xlu0 %v266
  %v268 = vpop.xlane.xlu0 %267
  %v269 = vsel %vm96, %v219, 0.0
  %270 = vadd.xlane.f32.xlu0 %v269
  %v271 = vpop.xlane.xlu0 %270
  %v272 = vsel %vm96, %v220, 0.0
  %273 = vadd.xlane.f32.xlu0 %v272
  %v274 = vpop.xlane.xlu0 %273
  %v275 = vsel %vm96, %v221, 0.0
  %276 = vadd.xlane.f32.xlu0 %v275
  %v277 = vpop.xlane.xlu0 %276
  %v278 = vsel %vm96, %v222, 0.0
  %279 = vadd.xlane.f32.xlu0 %v278
  %v280 = vpop.xlane.xlu0 %279
  %v281 = vsel %vm96, %v223, 0.0
  %282 = vadd.xlane.f32.xlu0 %v281
  %v283 = vpop.xlane.xlu0 %282
  %v284 = vmul.f32 %v226, %v163
  %v285 = vmul.f32 %v229, %v163
  %v286 = vmul.f32 %v232, %v163
  %v287 = vmul.f32 %v235, %v163
  %v288 = vmul.f32 %v238, %v163
  %v289 = vmul.f32 %v241, %v163
  %v290 = vmul.f32 %v244, %v163
  %v291 = vmul.f32 %v247, %v163
  %v292 = vmul.f32 %v250, %v163
  %v293 = vmul.f32 %v253, %v163
  %v294 = vmul.f32 %v256, %v163
  %v295 = vmul.f32 %v259, %v163
  %v296 = vmul.f32 %v262, %v163
  %v297 = vmul.f32 %v265, %v163
  %v298 = vmul.f32 %v268, %v163
  %v299 = vmul.f32 %v271, %v163
  %v300 = vmul.f32 %v274, %v163
  %v301 = vmul.f32 %v277, %v163
  %v302 = vmul.f32 %v280, %v163
  %v303 = vmul.f32 %v283, %v163
  %v304 = vadd.f32 %v284, 1e-05
  %v305 = vadd.f32 %v285, 1e-05
  %v306 = vadd.f32 %v286, 1e-05
  %v307 = vadd.f32 %v287, 1e-05
  %v308 = vadd.f32 %v288, 1e-05
  %v309 = vadd.f32 %v289, 1e-05
  %v310 = vadd.f32 %v290, 1e-05
  %v311 = vadd.f32 %v291, 1e-05
  %v312 = vadd.f32 %v292, 1e-05
  %v313 = vadd.f32 %v293, 1e-05
  %v314 = vadd.f32 %v294, 1e-05
  %v315 = vadd.f32 %v295, 1e-05
  %v316 = vadd.f32 %v296, 1e-05
  %v317 = vadd.f32 %v297, 1e-05
  %v318 = vadd.f32 %v298, 1e-05
  %v319 = vadd.f32 %v299, 1e-05
  %v320 = vadd.f32 %v300, 1e-05
  %v321 = vadd.f32 %v301, 1e-05
  %v322 = vadd.f32 %v302, 1e-05
  %v323 = vadd.f32 %v303, 1e-05
  %v324 = vrsqrt.pop %v304
  %v325 = vmul.f32 %v324, %v304
  %v326 = vmul.f32 %v325, %v324
  %v327 = vmul.f32 0.5, %v326
  %v328 = vsub.f32 1.5, %v327
  %v329 = vmul.f32 %v324, %v328
  %vm330 = vweird.f32 %v304
  %vm331 = vweird.f32 %v324
  %vm332 = vmor %vm330, %vm331
  %v333 = vsel %vm332, %v324, %v329
  %v334 = vrsqrt.pop %v305
  %v335 = vmul.f32 %v334, %v305
  %v336 = vmul.f32 %v335, %v334
  %v337 = vmul.f32 0.5, %v336
  %v338 = vsub.f32 1.5, %v337
  %v339 = vmul.f32 %v334, %v338
  %vm340 = vweird.f32 %v305
  %vm341 = vweird.f32 %v334
  %vm342 = vmor %vm340, %vm341
  %v343 = vsel %vm342, %v334, %v339
  %v344 = vrsqrt.pop %v306
  %v345 = vmul.f32 %v344, %v306
  %v346 = vmul.f32 %v345, %v344
  %v347 = vmul.f32 0.5, %v346
  %v348 = vsub.f32 1.5, %v347
  %v349 = vmul.f32 %v344, %v348
  %vm350 = vweird.f32 %v306
  %vm351 = vweird.f32 %v344
  %vm352 = vmor %vm350, %vm351
  %v353 = vsel %vm352, %v344, %v349
  %v354 = vrsqrt.pop %v307
  %v355 = vmul.f32 %v354, %v307
  %v356 = vmul.f32 %v355, %v354
  %v357 = vmul.f32 0.5, %v356
  %v358 = vsub.f32 1.5, %v357
  %v359 = vmul.f32 %v354, %v358
  %vm360 = vweird.f32 %v307
  %vm361 = vweird.f32 %v354
  %vm362 = vmor %vm360, %vm361
  %v363 = vsel %vm362, %v354, %v359
  %v364 = vrsqrt.pop %v308
  %v365 = vmul.f32 %v364, %v308
  %v366 = vmul.f32 %v365, %v364
  %v367 = vmul.f32 0.5, %v366
  %v368 = vsub.f32 1.5, %v367
  %v369 = vmul.f32 %v364, %v368
  %vm370 = vweird.f32 %v308
  %vm371 = vweird.f32 %v364
  %vm372 = vmor %vm370, %vm371
  %v373 = vsel %vm372, %v364, %v369
  %v374 = vrsqrt.pop %v309
  %v375 = vmul.f32 %v374, %v309
  %v376 = vmul.f32 %v375, %v374
  %v377 = vmul.f32 0.5, %v376
  %v378 = vsub.f32 1.5, %v377
  %v379 = vmul.f32 %v374, %v378
  %vm380 = vweird.f32 %v309
  %vm381 = vweird.f32 %v374
  %vm382 = vmor %vm380, %vm381
  %v383 = vsel %vm382, %v374, %v379
  %v384 = vrsqrt.pop %v310
  %v385 = vmul.f32 %v384, %v310
  %v386 = vmul.f32 %v385, %v384
  %v387 = vmul.f32 0.5, %v386
  %v388 = vsub.f32 1.5, %v387
  %v389 = vmul.f32 %v384, %v388
  %vm390 = vweird.f32 %v310
  %vm391 = vweird.f32 %v384
  %vm392 = vmor %vm390, %vm391
  %v393 = vsel %vm392, %v384, %v389
  %v394 = vrsqrt.pop %v311
  %v395 = vmul.f32 %v394, %v311
  %v396 = vmul.f32 %v395, %v394
  %v397 = vmul.f32 0.5, %v396
  %v398 = vsub.f32 1.5, %v397
  %v399 = vmul.f32 %v394, %v398
  %vm400 = vweird.f32 %v311
  %vm401 = vweird.f32 %v394
  %vm402 = vmor %vm400, %vm401
  %v403 = vsel %vm402, %v394, %v399
  %v404 = vrsqrt.pop %v312
  %v405 = vmul.f32 %v404, %v312
  %v406 = vmul.f32 %v405, %v404
  %v407 = vmul.f32 0.5, %v406
  %v408 = vsub.f32 1.5, %v407
  %v409 = vmul.f32 %v404, %v408
  %vm410 = vweird.f32 %v312
  %vm411 = vweird.f32 %v404
  %vm412 = vmor %vm410, %vm411
  %v413 = vsel %vm412, %v404, %v409
  %v414 = vrsqrt.pop %v313
  %v415 = vmul.f32 %v414, %v313
  %v416 = vmul.f32 %v415, %v414
  %v417 = vmul.f32 0.5, %v416
  %v418 = vsub.f32 1.5, %v417
  %v419 = vmul.f32 %v414, %v418
  %vm420 = vweird.f32 %v313
  %vm421 = vweird.f32 %v414
  %vm422 = vmor %vm420, %vm421
  %v423 = vsel %vm422, %v414, %v419
  %v424 = vrsqrt.pop %v314
  %v425 = vmul.f32 %v424, %v314
  %v426 = vmul.f32 %v425, %v424
  %v427 = vmul.f32 0.5, %v426
  %v428 = vsub.f32 1.5, %v427
  %v429 = vmul.f32 %v424, %v428
  %vm430 = vweird.f32 %v314
  %vm431 = vweird.f32 %v424
  %vm432 = vmor %vm430, %vm431
  %v433 = vsel %vm432, %v424, %v429
  %v434 = vrsqrt.pop %v315
  %v435 = vmul.f32 %v434, %v315
  %v436 = vmul.f32 %v435, %v434
  %v437 = vmul.f32 0.5, %v436
  %v438 = vsub.f32 1.5, %v437
  %v439 = vmul.f32 %v434, %v438
  %vm440 = vweird.f32 %v315
  %vm441 = vweird.f32 %v434
  %vm442 = vmor %vm440, %vm441
  %v443 = vsel %vm442, %v434, %v439
  %v444 = vrsqrt.pop %v316
  %v445 = vmul.f32 %v444, %v316
  %v446 = vmul.f32 %v445, %v444
  %v447 = vmul.f32 0.5, %v446
  %v448 = vsub.f32 1.5, %v447
  %v449 = vmul.f32 %v444, %v448
  %vm450 = vweird.f32 %v316
  %vm451 = vweird.f32 %v444
  %vm452 = vmor %vm450, %vm451
  %v453 = vsel %vm452, %v444, %v449
  %v454 = vrsqrt.pop %v317
  %v455 = vmul.f32 %v454, %v317
  %v456 = vmul.f32 %v455, %v454
  %v457 = vmul.f32 0.5, %v456
  %v458 = vsub.f32 1.5, %v457
  %v459 = vmul.f32 %v454, %v458
  %vm460 = vweird.f32 %v317
  %vm461 = vweird.f32 %v454
  %vm462 = vmor %vm460, %vm461
  %v463 = vsel %vm462, %v454, %v459
  %v464 = vrsqrt.pop %v318
  %v465 = vmul.f32 %v464, %v318
  %v466 = vmul.f32 %v465, %v464
  %v467 = vmul.f32 0.5, %v466
  %v468 = vsub.f32 1.5, %v467
  %v469 = vmul.f32 %v464, %v468
  %vm470 = vweird.f32 %v318
  %vm471 = vweird.f32 %v464
  %vm472 = vmor %vm470, %vm471
  %v473 = vsel %vm472, %v464, %v469
  %v474 = vrsqrt.pop %v319
  %v475 = vmul.f32 %v474, %v319
  %v476 = vmul.f32 %v475, %v474
  %v477 = vmul.f32 0.5, %v476
  %v478 = vsub.f32 1.5, %v477
  %v479 = vmul.f32 %v474, %v478
  %vm480 = vweird.f32 %v319
  %vm481 = vweird.f32 %v474
  %vm482 = vmor %vm480, %vm481
  %v483 = vsel %vm482, %v474, %v479
  %v484 = vrsqrt.pop %v320
  %v485 = vmul.f32 %v484, %v320
  %v486 = vmul.f32 %v485, %v484
  %v487 = vmul.f32 0.5, %v486
  %v488 = vsub.f32 1.5, %v487
  %v489 = vmul.f32 %v484, %v488
  %vm490 = vweird.f32 %v320
  %vm491 = vweird.f32 %v484
  %vm492 = vmor %vm490, %vm491
  %v493 = vsel %vm492, %v484, %v489
  %v494 = vrsqrt.pop %v321
  %v495 = vmul.f32 %v494, %v321
  %v496 = vmul.f32 %v495, %v494
  %v497 = vmul.f32 0.5, %v496
  %v498 = vsub.f32 1.5, %v497
  %v499 = vmul.f32 %v494, %v498
  %vm500 = vweird.f32 %v321
  %vm501 = vweird.f32 %v494
  %vm502 = vmor %vm500, %vm501
  %v503 = vsel %vm502, %v494, %v499
  %v504 = vrsqrt.pop %v322
  %v505 = vmul.f32 %v504, %v322
  %v506 = vmul.f32 %v505, %v504
  %v507 = vmul.f32 0.5, %v506
  %v508 = vsub.f32 1.5, %v507
  %v509 = vmul.f32 %v504, %v508
  %vm510 = vweird.f32 %v322
  %vm511 = vweird.f32 %v504
  %vm512 = vmor %vm510, %vm511
  %v513 = vsel %vm512, %v504, %v509
  %v514 = vrsqrt.pop %v323
  %v515 = vmul.f32 %v514, %v323
  %v516 = vmul.f32 %v515, %v514
  %v517 = vmul.f32 0.5, %v516
  %v518 = vsub.f32 1.5, %v517
  %v519 = vmul.f32 %v514, %v518
  %vm520 = vweird.f32 %v323
  %vm521 = vweird.f32 %v514
  %vm522 = vmor %vm520, %vm521
  %v523 = vsel %vm522, %v514, %v519
  %v524 = vmul.f32 %v184, %v333
  %v525 = vmul.f32 %v185, %v343
  %v526 = vmul.f32 %v186, %v353
  %v527 = vmul.f32 %v187, %v363
  %v528 = vmul.f32 %v188, %v373
  %v529 = vmul.f32 %v189, %v383
  %v530 = vmul.f32 %v190, %v393
  %v531 = vmul.f32 %v191, %v403
  %v532 = vmul.f32 %v192, %v413
  %v533 = vmul.f32 %v193, %v423
  %v534 = vmul.f32 %v194, %v433
  %v535 = vmul.f32 %v195, %v443
  %v536 = vmul.f32 %v196, %v453
  %v537 = vmul.f32 %v197, %v463
  %v538 = vmul.f32 %v198, %v473
  %v539 = vmul.f32 %v199, %v483
  %v540 = vmul.f32 %v200, %v493
  %v541 = vmul.f32 %v201, %v503
  %v542 = vmul.f32 %v202, %v513
  %v543 = vmul.f32 %v203, %v523
  %v544 = vld [vmem:[%s2] sm:$0x1]
  %v546 = vperm.slane %v544, 0
  %v548 = vmul.f32 %v524, %v546
  %v549 = vmul.f32 %v525, %v546
  %v550 = vmul.f32 %v526, %v546
  %v551 = vmul.f32 %v527, %v546
  %v552 = vmul.f32 %v528, %v546
  %v553 = vmul.f32 %v529, %v546
  %v554 = vmul.f32 %v530, %v546
  %v555 = vmul.f32 %v531, %v546
  %v556 = vmul.f32 %v532, %v546
  %v557 = vmul.f32 %v533, %v546
  %v558 = vmul.f32 %v534, %v546
  %v559 = vmul.f32 %v535, %v546
  %v560 = vmul.f32 %v536, %v546
  %v561 = vmul.f32 %v537, %v546
  %v562 = vmul.f32 %v538, %v546
  %v563 = vmul.f32 %v539, %v546
  %v564 = vmul.f32 %v540, %v546
  %v565 = vmul.f32 %v541, %v546
  %v566 = vmul.f32 %v542, %v546
  %v567 = vmul.f32 %v543, %v546
  %v568 = vld [vmem:[%s3] sm:$0x1]
  %v570 = vperm.slane %v568, 0
  %v572 = vadd.f32 %v548, %v570
  %v573 = vadd.f32 %v549, %v570
  %v574 = vadd.f32 %v550, %v570
  %v575 = vadd.f32 %v551, %v570
  %v576 = vadd.f32 %v552, %v570
  %v577 = vadd.f32 %v553, %v570
  %v578 = vadd.f32 %v554, %v570
  %v579 = vadd.f32 %v555, %v570
  %v580 = vadd.f32 %v556, %v570
  %v581 = vadd.f32 %v557, %v570
  %v582 = vadd.f32 %v558, %v570
  %v583 = vadd.f32 %v559, %v570
  %v584 = vadd.f32 %v560, %v570
  %v585 = vadd.f32 %v561, %v570
  %v586 = vadd.f32 %v562, %v570
  %v587 = vadd.f32 %v563, %v570
  %v588 = vadd.f32 %v564, %v570
  %v589 = vadd.f32 %v565, %v570
  %v590 = vadd.f32 %v566, %v570
  %v591 = vadd.f32 %v567, %v570
  %v592 = vpack.c.bf16 %v573, %v572
  %v593 = vpack.c.bf16 %v575, %v574
  %v594 = vpack.c.bf16 %v577, %v576
  %v595 = vpack.c.bf16 %v579, %v578
  %v596 = vpack.c.bf16 %v581, %v580
  %v597 = vpack.c.bf16 %v583, %v582
  %v598 = vpack.c.bf16 %v585, %v584
  %v599 = vpack.c.bf16 %v587, %v586
  %v600 = vpack.c.bf16 %v589, %v588
  %v601 = vpack.c.bf16 %v591, %v590
  %v602 = vld [vmem:[%s4] sm:$0xf]
  %v603 = vld [vmem:[%s4 + $0x4] sm:$0xf]
  %v604 = vld [vmem:[%s4 + $0x8] sm:$0xf]
  %v605 = vld [vmem:[%s4 + $0xc] sm:$0xf]
  %v606 = vld [vmem:[%s5] sm:$0x1]
  %v608 = vperm.slane %v606, 0
  %v614 = vunpack.c.l.b16 %v602
  %v615 = vunpack.c.l.b16 %v603
  %v616 = vunpack.c.l.b16 %v604
  %v617 = vunpack.c.l.b16 %v605
  %v618 = vpack.c.b16 %v615, %v614
  %v619 = vpack.c.b16 %v617, %v616
  %v623 = vsel %vm96, %v592, 0
  %v626 = vsel %vm96, %v593, 0
  %v629 = vsel %vm96, %v594, 0
  %v632 = vsel %vm96, %v595, 0
  %v635 = vsel %vm96, %v596, 0
  %v638 = vsel %vm96, %v597, 0
  %v641 = vsel %vm96, %v598, 0
  %v644 = vsel %vm96, %v599, 0
  %v647 = vsel %vm96, %v600, 0
  %v650 = vsel %vm96, %v601, 0
  %652 = vmatpush.bf16.msra.mxu0 0
  %653 = vmatpush.bf16.msra.mxu0 0
  %654 = vmatpush.bf16.msra.mxu0 0
  %655 = vmatpush.bf16.msra.mxu0 0
  %656 = vmatpush.bf16.msra.mxu0 0
  %657 = vmatpush.bf16.msra.mxu0 0
  %658 = vmatpush.bf16.msra.mxu0 %v619
  %659 = vmatpush.bf16.msra.mxu0 %v618
  %660 = vmatmul.bf16.gmra.mxu0 %v623
  %v661 = vpop.f32.mrf.mxu0
  %v662 = vadd.f32 %v608, %v661
  %v663 = vpop.f32.mrf.mxu0
  %v664 = vadd.f32 %v608, %v663
  %665 = vmatmul.bf16.gmra.mxu0 %v626
  %v666 = vpop.f32.mrf.mxu0
  %v667 = vadd.f32 %v608, %v666
  %v668 = vpop.f32.mrf.mxu0
  %v669 = vadd.f32 %v608, %v668
  %670 = vmatmul.bf16.gmra.mxu0 %v629
  %v671 = vpop.f32.mrf.mxu0
  %v672 = vadd.f32 %v608, %v671
  %v673 = vpop.f32.mrf.mxu0
  %v674 = vadd.f32 %v608, %v673
  %675 = vmatmul.bf16.gmra.mxu0 %v632
  %v676 = vpop.f32.mrf.mxu0
  %v677 = vadd.f32 %v608, %v676
  %v678 = vpop.f32.mrf.mxu0
  %v679 = vadd.f32 %v608, %v678
  %680 = vmatmul.bf16.gmra.mxu0 %v635
  %v681 = vpop.f32.mrf.mxu0
  %v682 = vadd.f32 %v608, %v681
  %v683 = vpop.f32.mrf.mxu0
  %v684 = vadd.f32 %v608, %v683
  %685 = vmatmul.bf16.gmra.mxu0 %v638
  %v686 = vpop.f32.mrf.mxu0
  %v687 = vadd.f32 %v608, %v686
  %v688 = vpop.f32.mrf.mxu0
  %v689 = vadd.f32 %v608, %v688
  %690 = vmatmul.bf16.gmra.mxu0 %v641
  %v691 = vpop.f32.mrf.mxu0
  %v692 = vadd.f32 %v608, %v691
  %v693 = vpop.f32.mrf.mxu0
  %v694 = vadd.f32 %v608, %v693
  %695 = vmatmul.bf16.gmra.mxu0 %v644
  %v696 = vpop.f32.mrf.mxu0
  %v697 = vadd.f32 %v608, %v696
  %v698 = vpop.f32.mrf.mxu0
  %v699 = vadd.f32 %v608, %v698
  %700 = vmatmul.bf16.gmra.mxu0 %v647
  %v701 = vpop.f32.mrf.mxu0
  %v702 = vadd.f32 %v608, %v701
  %v703 = vpop.f32.mrf.mxu0
  %v704 = vadd.f32 %v608, %v703
  %705 = vmatmul.bf16.gmra.mxu0 %v650
  %v706 = vpop.f32.mrf.mxu0
  %v707 = vadd.f32 %v608, %v706
  %v708 = vpop.f32.mrf.mxu0
  %v709 = vadd.f32 %v608, %v708
  %710 = vdwg.mxu0
  %v711 = vmax.f32 %v662, 0.0
  %v712 = vmax.f32 %v664, 0.0
  %v713 = vmax.f32 %v667, 0.0
  %v714 = vmax.f32 %v669, 0.0
  %v715 = vmax.f32 %v672, 0.0
  %v716 = vmax.f32 %v674, 0.0
  %v717 = vmax.f32 %v677, 0.0
  %v718 = vmax.f32 %v679, 0.0
  %v719 = vmax.f32 %v682, 0.0
  %v720 = vmax.f32 %v684, 0.0
  %v721 = vmax.f32 %v687, 0.0
  %v722 = vmax.f32 %v689, 0.0
  %v723 = vmax.f32 %v692, 0.0
  %v724 = vmax.f32 %v694, 0.0
  %v725 = vmax.f32 %v697, 0.0
  %v726 = vmax.f32 %v699, 0.0
  %v727 = vmax.f32 %v702, 0.0
  %v728 = vmax.f32 %v704, 0.0
  %v729 = vmax.f32 %v707, 0.0
  %v730 = vmax.f32 %v709, 0.0
  %v731 = vpack.c.bf16 %v712, %v711
  %v732 = vpack.c.bf16 %v714, %v713
  %v733 = vpack.c.bf16 %v716, %v715
  %v734 = vpack.c.bf16 %v718, %v717
  %v735 = vpack.c.bf16 %v720, %v719
  %v736 = vpack.c.bf16 %v722, %v721
  %v737 = vpack.c.bf16 %v724, %v723
  %v738 = vpack.c.bf16 %v726, %v725
  %v739 = vpack.c.bf16 %v728, %v727
  %v740 = vpack.c.bf16 %v730, %v729
  %v741 = vld [vmem:[%s6] sm:$0xf]
  %v742 = vld [vmem:[%s6 + $0x4] sm:$0xf]
  %v743 = vld [vmem:[%s6 + $0x8] sm:$0xf]
  %v744 = vld [vmem:[%s6 + $0xc] sm:$0xf]
  %v745 = vld [vmem:[%s6 + $0x10] sm:$0xf]
  %v746 = vld [vmem:[%s6 + $0x14] sm:$0xf]
  %v747 = vld [vmem:[%s6 + $0x18] sm:$0xf]
  %v748 = vld [vmem:[%s6 + $0x1c] sm:$0xf]
  %v749 = vld [vmem:[%s7] sm:$0x1]
  %v751 = vperm.slane %v749, 0
  %v761 = vunpack.c.l.b16 %v741
  %v762 = vunpack.c.l.b16 %v742
  %v763 = vunpack.c.l.b16 %v743
  %v764 = vunpack.c.l.b16 %v744
  %v765 = vunpack.c.l.b16 %v745
  %v766 = vunpack.c.l.b16 %v746
  %v767 = vunpack.c.l.b16 %v747
  %v768 = vunpack.c.l.b16 %v748
  %v769 = vpack.c.b16 %v762, %v761
  %v770 = vpack.c.b16 %v764, %v763
  %v771 = vpack.c.b16 %v766, %v765
  %v772 = vpack.c.b16 %v768, %v767
  %vm777 = vcmask 523264
  %v779 = vsel %vm777, %v731, 0
  %v782 = vsel %vm777, %v732, 0
  %v785 = vsel %vm777, %v733, 0
  %v788 = vsel %vm777, %v734, 0
  %v791 = vsel %vm777, %v735, 0
  %v794 = vsel %vm777, %v736, 0
  %v797 = vsel %vm777, %v737, 0
  %v800 = vsel %vm777, %v738, 0
  %v803 = vsel %vm777, %v739, 0
  %v806 = vsel %vm777, %v740, 0
  %808 = vmatpush.bf16.msra.mxu0 0
  %809 = vmatpush.bf16.msra.mxu0 0
  %810 = vmatpush.bf16.msra.mxu0 0
  %811 = vmatpush.bf16.msra.mxu0 0
  %812 = vmatpush.bf16.msra.mxu0 %v772
  %813 = vmatpush.bf16.msra.mxu0 %v771
  %814 = vmatpush.bf16.msra.mxu0 %v770
  %815 = vmatpush.bf16.msra.mxu0 %v769
  %816 = vmatmul.bf16.gmra.mxu0 %v779
  %v817 = vpop.f32.mrf.mxu0
  %v818 = vadd.f32 %v751, %v817
  %v819 = vpop.f32.mrf.mxu0
  %v820 = vadd.f32 %v751, %v819
  %821 = vmatmul.bf16.gmra.mxu0 %v782
  %v822 = vpop.f32.mrf.mxu0
  %v823 = vadd.f32 %v751, %v822
  %v824 = vpop.f32.mrf.mxu0
  %v825 = vadd.f32 %v751, %v824
  %826 = vmatmul.bf16.gmra.mxu0 %v785
  %v827 = vpop.f32.mrf.mxu0
  %v828 = vadd.f32 %v751, %v827
  %v829 = vpop.f32.mrf.mxu0
  %v830 = vadd.f32 %v751, %v829
  %831 = vmatmul.bf16.gmra.mxu0 %v788
  %v832 = vpop.f32.mrf.mxu0
  %v833 = vadd.f32 %v751, %v832
  %v834 = vpop.f32.mrf.mxu0
  %v835 = vadd.f32 %v751, %v834
  %836 = vmatmul.bf16.gmra.mxu0 %v791
  %v837 = vpop.f32.mrf.mxu0
  %v838 = vadd.f32 %v751, %v837
  %v839 = vpop.f32.mrf.mxu0
  %v840 = vadd.f32 %v751, %v839
  %841 = vmatmul.bf16.gmra.mxu0 %v794
  %v842 = vpop.f32.mrf.mxu0
  %v843 = vadd.f32 %v751, %v842
  %v844 = vpop.f32.mrf.mxu0
  %v845 = vadd.f32 %v751, %v844
  %846 = vmatmul.bf16.gmra.mxu0 %v797
  %v847 = vpop.f32.mrf.mxu0
  %v848 = vadd.f32 %v751, %v847
  %v849 = vpop.f32.mrf.mxu0
  %v850 = vadd.f32 %v751, %v849
  %851 = vmatmul.bf16.gmra.mxu0 %v800
  %v852 = vpop.f32.mrf.mxu0
  %v853 = vadd.f32 %v751, %v852
  %v854 = vpop.f32.mrf.mxu0
  %v855 = vadd.f32 %v751, %v854
  %856 = vmatmul.bf16.gmra.mxu0 %v803
  %v857 = vpop.f32.mrf.mxu0
  %v858 = vadd.f32 %v751, %v857
  %v859 = vpop.f32.mrf.mxu0
  %v860 = vadd.f32 %v751, %v859
  %861 = vmatmul.bf16.gmra.mxu0 %v806
  %v862 = vpop.f32.mrf.mxu0
  %v863 = vadd.f32 %v751, %v862
  %v864 = vpop.f32.mrf.mxu0
  %v865 = vadd.f32 %v751, %v864
  %866 = vdwg.mxu0
  %v867 = vadd.f32 %v572, %v818
  %v868 = vadd.f32 %v573, %v820
  %v869 = vadd.f32 %v574, %v823
  %v870 = vadd.f32 %v575, %v825
  %v871 = vadd.f32 %v576, %v828
  %v872 = vadd.f32 %v577, %v830
  %v873 = vadd.f32 %v578, %v833
  %v874 = vadd.f32 %v579, %v835
  %v875 = vadd.f32 %v580, %v838
  %v876 = vadd.f32 %v581, %v840
  %v877 = vadd.f32 %v582, %v843
  %v878 = vadd.f32 %v583, %v845
  %v879 = vadd.f32 %v584, %v848
  %v880 = vadd.f32 %v585, %v850
  %v881 = vadd.f32 %v586, %v853
  %v882 = vadd.f32 %v587, %v855
  %v883 = vadd.f32 %v588, %v858
  %v884 = vadd.f32 %v589, %v860
  %v885 = vadd.f32 %v590, %v863
  %v886 = vadd.f32 %v591, %v865
  %v887 = vsel %vm96, %v867, 0.0
  %888 = vadd.xlane.f32.xlu0 %v887
  %v889 = vpop.xlane.xlu0 %888
  %v890 = vsel %vm96, %v868, 0.0
  %891 = vadd.xlane.f32.xlu0 %v890
  %v892 = vpop.xlane.xlu0 %891
  %v893 = vsel %vm96, %v869, 0.0
  %894 = vadd.xlane.f32.xlu0 %v893
  %v895 = vpop.xlane.xlu0 %894
  %v896 = vsel %vm96, %v870, 0.0
  %897 = vadd.xlane.f32.xlu0 %v896
  %v898 = vpop.xlane.xlu0 %897
  %v899 = vsel %vm96, %v871, 0.0
  %900 = vadd.xlane.f32.xlu0 %v899
  %v901 = vpop.xlane.xlu0 %900
  %v902 = vsel %vm96, %v872, 0.0
  %903 = vadd.xlane.f32.xlu0 %v902
  %v904 = vpop.xlane.xlu0 %903
  %v905 = vsel %vm96, %v873, 0.0
  %906 = vadd.xlane.f32.xlu0 %v905
  %v907 = vpop.xlane.xlu0 %906
  %v908 = vsel %vm96, %v874, 0.0
  %909 = vadd.xlane.f32.xlu0 %v908
  %v910 = vpop.xlane.xlu0 %909
  %v911 = vsel %vm96, %v875, 0.0
  %912 = vadd.xlane.f32.xlu0 %v911
  %v913 = vpop.xlane.xlu0 %912
  %v914 = vsel %vm96, %v876, 0.0
  %915 = vadd.xlane.f32.xlu0 %v914
  %v916 = vpop.xlane.xlu0 %915
  %v917 = vsel %vm96, %v877, 0.0
  %918 = vadd.xlane.f32.xlu0 %v917
  %v919 = vpop.xlane.xlu0 %918
  %v920 = vsel %vm96, %v878, 0.0
  %921 = vadd.xlane.f32.xlu0 %v920
  %v922 = vpop.xlane.xlu0 %921
  %v923 = vsel %vm96, %v879, 0.0
  %924 = vadd.xlane.f32.xlu0 %v923
  %v925 = vpop.xlane.xlu0 %924
  %v926 = vsel %vm96, %v880, 0.0
  %927 = vadd.xlane.f32.xlu0 %v926
  %v928 = vpop.xlane.xlu0 %927
  %v929 = vsel %vm96, %v881, 0.0
  %930 = vadd.xlane.f32.xlu0 %v929
  %v931 = vpop.xlane.xlu0 %930
  %v932 = vsel %vm96, %v882, 0.0
  %933 = vadd.xlane.f32.xlu0 %v932
  %v934 = vpop.xlane.xlu0 %933
  %v935 = vsel %vm96, %v883, 0.0
  %936 = vadd.xlane.f32.xlu0 %v935
  %v937 = vpop.xlane.xlu0 %936
  %v938 = vsel %vm96, %v884, 0.0
  %939 = vadd.xlane.f32.xlu0 %v938
  %v940 = vpop.xlane.xlu0 %939
  %v941 = vsel %vm96, %v885, 0.0
  %942 = vadd.xlane.f32.xlu0 %v941
  %v943 = vpop.xlane.xlu0 %942
  %v944 = vsel %vm96, %v886, 0.0
  %945 = vadd.xlane.f32.xlu0 %v944
  %v946 = vpop.xlane.xlu0 %945
  %v947 = vmul.f32 %v889, %v163
  %v948 = vmul.f32 %v892, %v163
  %v949 = vmul.f32 %v895, %v163
  %v950 = vmul.f32 %v898, %v163
  %v951 = vmul.f32 %v901, %v163
  %v952 = vmul.f32 %v904, %v163
  %v953 = vmul.f32 %v907, %v163
  %v954 = vmul.f32 %v910, %v163
  %v955 = vmul.f32 %v913, %v163
  %v956 = vmul.f32 %v916, %v163
  %v957 = vmul.f32 %v919, %v163
  %v958 = vmul.f32 %v922, %v163
  %v959 = vmul.f32 %v925, %v163
  %v960 = vmul.f32 %v928, %v163
  %v961 = vmul.f32 %v931, %v163
  %v962 = vmul.f32 %v934, %v163
  %v963 = vmul.f32 %v937, %v163
  %v964 = vmul.f32 %v940, %v163
  %v965 = vmul.f32 %v943, %v163
  %v966 = vmul.f32 %v946, %v163
  %v967 = vsub.f32 %v867, %v947
  %v968 = vsub.f32 %v868, %v948
  %v969 = vsub.f32 %v869, %v949
  %v970 = vsub.f32 %v870, %v950
  %v971 = vsub.f32 %v871, %v951
  %v972 = vsub.f32 %v872, %v952
  %v973 = vsub.f32 %v873, %v953
  %v974 = vsub.f32 %v874, %v954
  %v975 = vsub.f32 %v875, %v955
  %v976 = vsub.f32 %v876, %v956
  %v977 = vsub.f32 %v877, %v957
  %v978 = vsub.f32 %v878, %v958
  %v979 = vsub.f32 %v879, %v959
  %v980 = vsub.f32 %v880, %v960
  %v981 = vsub.f32 %v881, %v961
  %v982 = vsub.f32 %v882, %v962
  %v983 = vsub.f32 %v883, %v963
  %v984 = vsub.f32 %v884, %v964
  %v985 = vsub.f32 %v885, %v965
  %v986 = vsub.f32 %v886, %v966
  %v987 = vmul.f32 %v967, %v967
  %v988 = vmul.f32 %v968, %v968
  %v989 = vmul.f32 %v969, %v969
  %v990 = vmul.f32 %v970, %v970
  %v991 = vmul.f32 %v971, %v971
  %v992 = vmul.f32 %v972, %v972
  %v993 = vmul.f32 %v973, %v973
  %v994 = vmul.f32 %v974, %v974
  %v995 = vmul.f32 %v975, %v975
  %v996 = vmul.f32 %v976, %v976
  %v997 = vmul.f32 %v977, %v977
  %v998 = vmul.f32 %v978, %v978
  %v999 = vmul.f32 %v979, %v979
  %v1000 = vmul.f32 %v980, %v980
  %v1001 = vmul.f32 %v981, %v981
  %v1002 = vmul.f32 %v982, %v982
  %v1003 = vmul.f32 %v983, %v983
  %v1004 = vmul.f32 %v984, %v984
  %v1005 = vmul.f32 %v985, %v985
  %v1006 = vmul.f32 %v986, %v986
  %v1007 = vsel %vm96, %v987, 0.0
  %1008 = vadd.xlane.f32.xlu0 %v1007
  %v1009 = vpop.xlane.xlu0 %1008
  %v1010 = vsel %vm96, %v988, 0.0
  %1011 = vadd.xlane.f32.xlu0 %v1010
  %v1012 = vpop.xlane.xlu0 %1011
  %v1013 = vsel %vm96, %v989, 0.0
  %1014 = vadd.xlane.f32.xlu0 %v1013
  %v1015 = vpop.xlane.xlu0 %1014
  %v1016 = vsel %vm96, %v990, 0.0
  %1017 = vadd.xlane.f32.xlu0 %v1016
  %v1018 = vpop.xlane.xlu0 %1017
  %v1019 = vsel %vm96, %v991, 0.0
  %1020 = vadd.xlane.f32.xlu0 %v1019
  %v1021 = vpop.xlane.xlu0 %1020
  %v1022 = vsel %vm96, %v992, 0.0
  %1023 = vadd.xlane.f32.xlu0 %v1022
  %v1024 = vpop.xlane.xlu0 %1023
  %v1025 = vsel %vm96, %v993, 0.0
  %1026 = vadd.xlane.f32.xlu0 %v1025
  %v1027 = vpop.xlane.xlu0 %1026
  %v1028 = vsel %vm96, %v994, 0.0
  %1029 = vadd.xlane.f32.xlu0 %v1028
  %v1030 = vpop.xlane.xlu0 %1029
  %v1031 = vsel %vm96, %v995, 0.0
  %1032 = vadd.xlane.f32.xlu0 %v1031
  %v1033 = vpop.xlane.xlu0 %1032
  %v1034 = vsel %vm96, %v996, 0.0
  %1035 = vadd.xlane.f32.xlu0 %v1034
  %v1036 = vpop.xlane.xlu0 %1035
  %v1037 = vsel %vm96, %v997, 0.0
  %1038 = vadd.xlane.f32.xlu0 %v1037
  %v1039 = vpop.xlane.xlu0 %1038
  %v1040 = vsel %vm96, %v998, 0.0
  %1041 = vadd.xlane.f32.xlu0 %v1040
  %v1042 = vpop.xlane.xlu0 %1041
  %v1043 = vsel %vm96, %v999, 0.0
  %1044 = vadd.xlane.f32.xlu0 %v1043
  %v1045 = vpop.xlane.xlu0 %1044
  %v1046 = vsel %vm96, %v1000, 0.0
  %1047 = vadd.xlane.f32.xlu0 %v1046
  %v1048 = vpop.xlane.xlu0 %1047
  %v1049 = vsel %vm96, %v1001, 0.0
  %1050 = vadd.xlane.f32.xlu0 %v1049
  %v1051 = vpop.xlane.xlu0 %1050
  %v1052 = vsel %vm96, %v1002, 0.0
  %1053 = vadd.xlane.f32.xlu0 %v1052
  %v1054 = vpop.xlane.xlu0 %1053
  %v1055 = vsel %vm96, %v1003, 0.0
  %1056 = vadd.xlane.f32.xlu0 %v1055
  %v1057 = vpop.xlane.xlu0 %1056
  %v1058 = vsel %vm96, %v1004, 0.0
  %1059 = vadd.xlane.f32.xlu0 %v1058
  %v1060 = vpop.xlane.xlu0 %1059
  %v1061 = vsel %vm96, %v1005, 0.0
  %1062 = vadd.xlane.f32.xlu0 %v1061
  %v1063 = vpop.xlane.xlu0 %1062
  %v1064 = vsel %vm96, %v1006, 0.0
  %1065 = vadd.xlane.f32.xlu0 %v1064
  %v1066 = vpop.xlane.xlu0 %1065
  %v1067 = vmul.f32 %v1009, %v163
  %v1068 = vmul.f32 %v1012, %v163
  %v1069 = vmul.f32 %v1015, %v163
  %v1070 = vmul.f32 %v1018, %v163
  %v1071 = vmul.f32 %v1021, %v163
  %v1072 = vmul.f32 %v1024, %v163
  %v1073 = vmul.f32 %v1027, %v163
  %v1074 = vmul.f32 %v1030, %v163
  %v1075 = vmul.f32 %v1033, %v163
  %v1076 = vmul.f32 %v1036, %v163
  %v1077 = vmul.f32 %v1039, %v163
  %v1078 = vmul.f32 %v1042, %v163
  %v1079 = vmul.f32 %v1045, %v163
  %v1080 = vmul.f32 %v1048, %v163
  %v1081 = vmul.f32 %v1051, %v163
  %v1082 = vmul.f32 %v1054, %v163
  %v1083 = vmul.f32 %v1057, %v163
  %v1084 = vmul.f32 %v1060, %v163
  %v1085 = vmul.f32 %v1063, %v163
  %v1086 = vmul.f32 %v1066, %v163
  %v1087 = vadd.f32 %v1067, 1e-05
  %v1088 = vadd.f32 %v1068, 1e-05
  %v1089 = vadd.f32 %v1069, 1e-05
  %v1090 = vadd.f32 %v1070, 1e-05
  %v1091 = vadd.f32 %v1071, 1e-05
  %v1092 = vadd.f32 %v1072, 1e-05
  %v1093 = vadd.f32 %v1073, 1e-05
  %v1094 = vadd.f32 %v1074, 1e-05
  %v1095 = vadd.f32 %v1075, 1e-05
  %v1096 = vadd.f32 %v1076, 1e-05
  %v1097 = vadd.f32 %v1077, 1e-05
  %v1098 = vadd.f32 %v1078, 1e-05
  %v1099 = vadd.f32 %v1079, 1e-05
  %v1100 = vadd.f32 %v1080, 1e-05
  %v1101 = vadd.f32 %v1081, 1e-05
  %v1102 = vadd.f32 %v1082, 1e-05
  %v1103 = vadd.f32 %v1083, 1e-05
  %v1104 = vadd.f32 %v1084, 1e-05
  %v1105 = vadd.f32 %v1085, 1e-05
  %v1106 = vadd.f32 %v1086, 1e-05
  %v1107 = vrsqrt.pop %v1087
  %v1108 = vmul.f32 %v1107, %v1087
  %v1109 = vmul.f32 %v1108, %v1107
  %v1110 = vmul.f32 0.5, %v1109
  %v1111 = vsub.f32 1.5, %v1110
  %v1112 = vmul.f32 %v1107, %v1111
  %vm1113 = vweird.f32 %v1087
  %vm1114 = vweird.f32 %v1107
  %vm1115 = vmor %vm1113, %vm1114
  %v1116 = vsel %vm1115, %v1107, %v1112
  %v1117 = vrsqrt.pop %v1088
  %v1118 = vmul.f32 %v1117, %v1088
  %v1119 = vmul.f32 %v1118, %v1117
  %v1120 = vmul.f32 0.5, %v1119
  %v1121 = vsub.f32 1.5, %v1120
  %v1122 = vmul.f32 %v1117, %v1121
  %vm1123 = vweird.f32 %v1088
  %vm1124 = vweird.f32 %v1117
  %vm1125 = vmor %vm1123, %vm1124
  %v1126 = vsel %vm1125, %v1117, %v1122
  %v1127 = vrsqrt.pop %v1089
  %v1128 = vmul.f32 %v1127, %v1089
  %v1129 = vmul.f32 %v1128, %v1127
  %v1130 = vmul.f32 0.5, %v1129
  %v1131 = vsub.f32 1.5, %v1130
  %v1132 = vmul.f32 %v1127, %v1131
  %vm1133 = vweird.f32 %v1089
  %vm1134 = vweird.f32 %v1127
  %vm1135 = vmor %vm1133, %vm1134
  %v1136 = vsel %vm1135, %v1127, %v1132
  %v1137 = vrsqrt.pop %v1090
  %v1138 = vmul.f32 %v1137, %v1090
  %v1139 = vmul.f32 %v1138, %v1137
  %v1140 = vmul.f32 0.5, %v1139
  %v1141 = vsub.f32 1.5, %v1140
  %v1142 = vmul.f32 %v1137, %v1141
  %vm1143 = vweird.f32 %v1090
  %vm1144 = vweird.f32 %v1137
  %vm1145 = vmor %vm1143, %vm1144
  %v1146 = vsel %vm1145, %v1137, %v1142
  %v1147 = vrsqrt.pop %v1091
  %v1148 = vmul.f32 %v1147, %v1091
  %v1149 = vmul.f32 %v1148, %v1147
  %v1150 = vmul.f32 0.5, %v1149
  %v1151 = vsub.f32 1.5, %v1150
  %v1152 = vmul.f32 %v1147, %v1151
  %vm1153 = vweird.f32 %v1091
  %vm1154 = vweird.f32 %v1147
  %vm1155 = vmor %vm1153, %vm1154
  %v1156 = vsel %vm1155, %v1147, %v1152
  %v1157 = vrsqrt.pop %v1092
  %v1158 = vmul.f32 %v1157, %v1092
  %v1159 = vmul.f32 %v1158, %v1157
  %v1160 = vmul.f32 0.5, %v1159
  %v1161 = vsub.f32 1.5, %v1160
  %v1162 = vmul.f32 %v1157, %v1161
  %vm1163 = vweird.f32 %v1092
  %vm1164 = vweird.f32 %v1157
  %vm1165 = vmor %vm1163, %vm1164
  %v1166 = vsel %vm1165, %v1157, %v1162
  %v1167 = vrsqrt.pop %v1093
  %v1168 = vmul.f32 %v1167, %v1093
  %v1169 = vmul.f32 %v1168, %v1167
  %v1170 = vmul.f32 0.5, %v1169
  %v1171 = vsub.f32 1.5, %v1170
  %v1172 = vmul.f32 %v1167, %v1171
  %vm1173 = vweird.f32 %v1093
  %vm1174 = vweird.f32 %v1167
  %vm1175 = vmor %vm1173, %vm1174
  %v1176 = vsel %vm1175, %v1167, %v1172
  %v1177 = vrsqrt.pop %v1094
  %v1178 = vmul.f32 %v1177, %v1094
  %v1179 = vmul.f32 %v1178, %v1177
  %v1180 = vmul.f32 0.5, %v1179
  %v1181 = vsub.f32 1.5, %v1180
  %v1182 = vmul.f32 %v1177, %v1181
  %vm1183 = vweird.f32 %v1094
  %vm1184 = vweird.f32 %v1177
  %vm1185 = vmor %vm1183, %vm1184
  %v1186 = vsel %vm1185, %v1177, %v1182
  %v1187 = vrsqrt.pop %v1095
  %v1188 = vmul.f32 %v1187, %v1095
  %v1189 = vmul.f32 %v1188, %v1187
  %v1190 = vmul.f32 0.5, %v1189
  %v1191 = vsub.f32 1.5, %v1190
  %v1192 = vmul.f32 %v1187, %v1191
  %vm1193 = vweird.f32 %v1095
  %vm1194 = vweird.f32 %v1187
  %vm1195 = vmor %vm1193, %vm1194
  %v1196 = vsel %vm1195, %v1187, %v1192
  %v1197 = vrsqrt.pop %v1096
  %v1198 = vmul.f32 %v1197, %v1096
  %v1199 = vmul.f32 %v1198, %v1197
  %v1200 = vmul.f32 0.5, %v1199
  %v1201 = vsub.f32 1.5, %v1200
  %v1202 = vmul.f32 %v1197, %v1201
  %vm1203 = vweird.f32 %v1096
  %vm1204 = vweird.f32 %v1197
  %vm1205 = vmor %vm1203, %vm1204
  %v1206 = vsel %vm1205, %v1197, %v1202
  %v1207 = vrsqrt.pop %v1097
  %v1208 = vmul.f32 %v1207, %v1097
  %v1209 = vmul.f32 %v1208, %v1207
  %v1210 = vmul.f32 0.5, %v1209
  %v1211 = vsub.f32 1.5, %v1210
  %v1212 = vmul.f32 %v1207, %v1211
  %vm1213 = vweird.f32 %v1097
  %vm1214 = vweird.f32 %v1207
  %vm1215 = vmor %vm1213, %vm1214
  %v1216 = vsel %vm1215, %v1207, %v1212
  %v1217 = vrsqrt.pop %v1098
  %v1218 = vmul.f32 %v1217, %v1098
  %v1219 = vmul.f32 %v1218, %v1217
  %v1220 = vmul.f32 0.5, %v1219
  %v1221 = vsub.f32 1.5, %v1220
  %v1222 = vmul.f32 %v1217, %v1221
  %vm1223 = vweird.f32 %v1098
  %vm1224 = vweird.f32 %v1217
  %vm1225 = vmor %vm1223, %vm1224
  %v1226 = vsel %vm1225, %v1217, %v1222
  %v1227 = vrsqrt.pop %v1099
  %v1228 = vmul.f32 %v1227, %v1099
  %v1229 = vmul.f32 %v1228, %v1227
  %v1230 = vmul.f32 0.5, %v1229
  %v1231 = vsub.f32 1.5, %v1230
  %v1232 = vmul.f32 %v1227, %v1231
  %vm1233 = vweird.f32 %v1099
  %vm1234 = vweird.f32 %v1227
  %vm1235 = vmor %vm1233, %vm1234
  %v1236 = vsel %vm1235, %v1227, %v1232
  %v1237 = vrsqrt.pop %v1100
  %v1238 = vmul.f32 %v1237, %v1100
  %v1239 = vmul.f32 %v1238, %v1237
  %v1240 = vmul.f32 0.5, %v1239
  %v1241 = vsub.f32 1.5, %v1240
  %v1242 = vmul.f32 %v1237, %v1241
  %vm1243 = vweird.f32 %v1100
  %vm1244 = vweird.f32 %v1237
  %vm1245 = vmor %vm1243, %vm1244
  %v1246 = vsel %vm1245, %v1237, %v1242
  %v1247 = vrsqrt.pop %v1101
  %v1248 = vmul.f32 %v1247, %v1101
  %v1249 = vmul.f32 %v1248, %v1247
  %v1250 = vmul.f32 0.5, %v1249
  %v1251 = vsub.f32 1.5, %v1250
  %v1252 = vmul.f32 %v1247, %v1251
  %vm1253 = vweird.f32 %v1101
  %vm1254 = vweird.f32 %v1247
  %vm1255 = vmor %vm1253, %vm1254
  %v1256 = vsel %vm1255, %v1247, %v1252
  %v1257 = vrsqrt.pop %v1102
  %v1258 = vmul.f32 %v1257, %v1102
  %v1259 = vmul.f32 %v1258, %v1257
  %v1260 = vmul.f32 0.5, %v1259
  %v1261 = vsub.f32 1.5, %v1260
  %v1262 = vmul.f32 %v1257, %v1261
  %vm1263 = vweird.f32 %v1102
  %vm1264 = vweird.f32 %v1257
  %vm1265 = vmor %vm1263, %vm1264
  %v1266 = vsel %vm1265, %v1257, %v1262
  %v1267 = vrsqrt.pop %v1103
  %v1268 = vmul.f32 %v1267, %v1103
  %v1269 = vmul.f32 %v1268, %v1267
  %v1270 = vmul.f32 0.5, %v1269
  %v1271 = vsub.f32 1.5, %v1270
  %v1272 = vmul.f32 %v1267, %v1271
  %vm1273 = vweird.f32 %v1103
  %vm1274 = vweird.f32 %v1267
  %vm1275 = vmor %vm1273, %vm1274
  %v1276 = vsel %vm1275, %v1267, %v1272
  %v1277 = vrsqrt.pop %v1104
  %v1278 = vmul.f32 %v1277, %v1104
  %v1279 = vmul.f32 %v1278, %v1277
  %v1280 = vmul.f32 0.5, %v1279
  %v1281 = vsub.f32 1.5, %v1280
  %v1282 = vmul.f32 %v1277, %v1281
  %vm1283 = vweird.f32 %v1104
  %vm1284 = vweird.f32 %v1277
  %vm1285 = vmor %vm1283, %vm1284
  %v1286 = vsel %vm1285, %v1277, %v1282
  %v1287 = vrsqrt.pop %v1105
  %v1288 = vmul.f32 %v1287, %v1105
  %v1289 = vmul.f32 %v1288, %v1287
  %v1290 = vmul.f32 0.5, %v1289
  %v1291 = vsub.f32 1.5, %v1290
  %v1292 = vmul.f32 %v1287, %v1291
  %vm1293 = vweird.f32 %v1105
  %vm1294 = vweird.f32 %v1287
  %vm1295 = vmor %vm1293, %vm1294
  %v1296 = vsel %vm1295, %v1287, %v1292
  %v1297 = vrsqrt.pop %v1106
  %v1298 = vmul.f32 %v1297, %v1106
  %v1299 = vmul.f32 %v1298, %v1297
  %v1300 = vmul.f32 0.5, %v1299
  %v1301 = vsub.f32 1.5, %v1300
  %v1302 = vmul.f32 %v1297, %v1301
  %vm1303 = vweird.f32 %v1106
  %vm1304 = vweird.f32 %v1297
  %vm1305 = vmor %vm1303, %vm1304
  %v1306 = vsel %vm1305, %v1297, %v1302
  %v1307 = vmul.f32 %v967, %v1116
  %v1308 = vmul.f32 %v968, %v1126
  %v1309 = vmul.f32 %v969, %v1136
  %v1310 = vmul.f32 %v970, %v1146
  %v1311 = vmul.f32 %v971, %v1156
  %v1312 = vmul.f32 %v972, %v1166
  %v1313 = vmul.f32 %v973, %v1176
  %v1314 = vmul.f32 %v974, %v1186
  %v1315 = vmul.f32 %v975, %v1196
  %v1316 = vmul.f32 %v976, %v1206
  %v1317 = vmul.f32 %v977, %v1216
  %v1318 = vmul.f32 %v978, %v1226
  %v1319 = vmul.f32 %v979, %v1236
  %v1320 = vmul.f32 %v980, %v1246
  %v1321 = vmul.f32 %v981, %v1256
  %v1322 = vmul.f32 %v982, %v1266
  %v1323 = vmul.f32 %v983, %v1276
  %v1324 = vmul.f32 %v984, %v1286
  %v1325 = vmul.f32 %v985, %v1296
  %v1326 = vmul.f32 %v986, %v1306
  %v1327 = vld [vmem:[%s8] sm:$0x1]
  %v1329 = vperm.slane %v1327, 0
  %v1331 = vmul.f32 %v1307, %v1329
  %v1332 = vmul.f32 %v1308, %v1329
  %v1333 = vmul.f32 %v1309, %v1329
  %v1334 = vmul.f32 %v1310, %v1329
  %v1335 = vmul.f32 %v1311, %v1329
  %v1336 = vmul.f32 %v1312, %v1329
  %v1337 = vmul.f32 %v1313, %v1329
  %v1338 = vmul.f32 %v1314, %v1329
  %v1339 = vmul.f32 %v1315, %v1329
  %v1340 = vmul.f32 %v1316, %v1329
  %v1341 = vmul.f32 %v1317, %v1329
  %v1342 = vmul.f32 %v1318, %v1329
  %v1343 = vmul.f32 %v1319, %v1329
  %v1344 = vmul.f32 %v1320, %v1329
  %v1345 = vmul.f32 %v1321, %v1329
  %v1346 = vmul.f32 %v1322, %v1329
  %v1347 = vmul.f32 %v1323, %v1329
  %v1348 = vmul.f32 %v1324, %v1329
  %v1349 = vmul.f32 %v1325, %v1329
  %v1350 = vmul.f32 %v1326, %v1329
  %v1351 = vld [vmem:[%s9] sm:$0x1]
  %v1353 = vperm.slane %v1351, 0
  %v1355 = vadd.f32 %v1331, %v1353
  %v1356 = vadd.f32 %v1332, %v1353
  %v1357 = vadd.f32 %v1333, %v1353
  %v1358 = vadd.f32 %v1334, %v1353
  %v1359 = vadd.f32 %v1335, %v1353
  %v1360 = vadd.f32 %v1336, %v1353
  %v1361 = vadd.f32 %v1337, %v1353
  %v1362 = vadd.f32 %v1338, %v1353
  %v1363 = vadd.f32 %v1339, %v1353
  %v1364 = vadd.f32 %v1340, %v1353
  %v1365 = vadd.f32 %v1341, %v1353
  %v1366 = vadd.f32 %v1342, %v1353
  %v1367 = vadd.f32 %v1343, %v1353
  %v1368 = vadd.f32 %v1344, %v1353
  %v1369 = vadd.f32 %v1345, %v1353
  %v1370 = vadd.f32 %v1346, %v1353
  %v1371 = vadd.f32 %v1347, %v1353
  %v1372 = vadd.f32 %v1348, %v1353
  %v1373 = vadd.f32 %v1349, %v1353
  %v1374 = vadd.f32 %v1350, %v1353
  %1375 = vst.msk [vmem:[%s10] sm:$0xff] %vm96, %v1355
  %1376 = vst.msk [vmem:[%s10 + $0x8] sm:$0xff] %vm96, %v1356
  %1377 = vst.msk [vmem:[%s10 + $0x10] sm:$0xff] %vm96, %v1357
  %1378 = vst.msk [vmem:[%s10 + $0x18] sm:$0xff] %vm96, %v1358
  %1379 = vst.msk [vmem:[%s10 + $0x20] sm:$0xff] %vm96, %v1359
  %1380 = vst.msk [vmem:[%s10 + $0x28] sm:$0xff] %vm96, %v1360
  %1381 = vst.msk [vmem:[%s10 + $0x30] sm:$0xff] %vm96, %v1361
  %1382 = vst.msk [vmem:[%s10 + $0x38] sm:$0xff] %vm96, %v1362
  %1383 = vst.msk [vmem:[%s10 + $0x40] sm:$0xff] %vm96, %v1363
  %1384 = vst.msk [vmem:[%s10 + $0x48] sm:$0xff] %vm96, %v1364
  %1385 = vst.msk [vmem:[%s10 + $0x50] sm:$0xff] %vm96, %v1365
  %1386 = vst.msk [vmem:[%s10 + $0x58] sm:$0xff] %vm96, %v1366
  %1387 = vst.msk [vmem:[%s10 + $0x60] sm:$0xff] %vm96, %v1367
  %1388 = vst.msk [vmem:[%s10 + $0x68] sm:$0xff] %vm96, %v1368
  %1389 = vst.msk [vmem:[%s10 + $0x70] sm:$0xff] %vm96, %v1369
  %1390 = vst.msk [vmem:[%s10 + $0x78] sm:$0xff] %vm96, %v1370
  %1391 = vst.msk [vmem:[%s10 + $0x80] sm:$0xff] %vm96, %v1371
  %1392 = vst.msk [vmem:[%s10 + $0x88] sm:$0xff] %vm96, %v1372
  %1393 = vst.msk [vmem:[%s10 + $0x90] sm:$0xff] %vm96, %v1373
  %1394 = vst.msk [vmem:[%s10 + $0x98] sm:$0xff] %vm96, %v1374
  // Predicated region
  $region42: #{encoder_layer_forward.7} parent=0 // pred_check
    _
  $region43: #{encoder_layer_forward.7} parent=0 // pred_check_branch
    %1396 = sbr.rel (0) target = $region45
  $region44: #{encoder_layer_forward.7} parent=0 // pred_region
    _
  $region45: #{encoder_layer_forward.7} parent=0 // pred_fallthru
    _
  // Predicated region
  $region46: #{encoder_layer_forward.7} parent=0 // pred_check
    _
  $region47: #{encoder_layer_forward.7} parent=0 // pred_check_branch
    %1398 = sbr.rel (0) target = $region49
  $region48: #{encoder_layer_forward.7} parent=0 // pred_region
    _
  $region49: #{encoder_layer_forward.7} parent=0 // pred_fallthru
    _

</llo_original>
